<compile_context>
chip_gen: v5e
topology: v5e:2x2
jax: 0.10.0
libtpu: 0.0.40
codegen_flags: <defaults>
</compile_context>

<pallas_src>
import numpy as np

import jax
import jax.numpy as jnp
from jax.experimental import pallas as pl
from jax.experimental.pallas import tpu as pltpu


LANES = 128


def _make_pool_bn_kernel(pool_type, k, s, p, N, H, W, Ho, Wo, eps, use_scratch):
    """Builds the fused pool+BN kernel for one channel block."""
    inv_n = 1.0 / float(N * Ho * Wo)
    is_max = pool_type == "max"
    pad_val = float("-inf") if is_max else 0.0

    def combine(a, b):
        return jnp.maximum(a, b) if is_max else a + b

    def kernel(*refs):
        idx = 0
        x_ref = refs[idx]; idx += 1
        if pool_type == "avg":
            inv_cnt_ref = refs[idx]; idx += 1
        else:
            inv_cnt_ref = None
        g_ref = refs[idx]; idx += 1
        b_ref = refs[idx]; idx += 1
        out_ref = refs[idx]; idx += 1
        pad_ref = refs[idx] if use_scratch else None

        x = x_ref[...].astype(jnp.float32)

        if pad_ref is not None:
            # The halo (pooling identity) is identical for every channel block
            # and the scratch persists across grid steps -> fill it only once.
            @pl.when(pl.program_id(0) == 0)
            def _fill_halo():
                pad_ref[...] = jnp.full(pad_ref.shape, pad_val, dtype=jnp.float32)

            pad_ref[:, p:p + H, p:p + W, :] = x
            xp = pad_ref[...]
        else:
            xp = x

        # Separable pooling: H first (leading-dim slices are plain address
        # offsets), then W (sublane-offset slices on the smaller intermediate).
        h_len = (Ho - 1) * s + 1
        acc_h = xp[:, 0:h_len:s, :, :]
        for kh in range(1, k):
            acc_h = combine(acc_h, xp[:, kh:kh + h_len:s, :, :])

        w_len = (Wo - 1) * s + 1
        acc = acc_h[:, :, 0:w_len:s, :]
        for kw in range(1, k):
            acc = combine(acc, acc_h[:, :, kw:kw + w_len:s, :])

        if pool_type == "avg":
            # count_include_pad=False: divide by the per-position valid count.
            pooled = acc * inv_cnt_ref[...]            # (1,Ho,Wo,1) broadcast
        else:
            pooled = acc

        # BatchNorm2d (training mode), one-pass per-channel stats in f32.
        s1 = jnp.sum(pooled, axis=(0, 1, 2), keepdims=True)            # (1,1,1,Cblk)
        s2 = jnp.sum(pooled * pooled, axis=(0, 1, 2), keepdims=True)   # (1,1,1,Cblk)
        mean = s1 * inv_n
        var = jnp.maximum(s2 * inv_n - mean * mean, 0.0)
        rstd = jax.lax.rsqrt(var + eps)

        # Fold affine: y = pooled * scale + shift.
        scale = g_ref[...] * rstd
        shift = b_ref[...] - mean * scale
        out_ref[...] = (pooled * scale + shift).astype(out_ref.dtype)

    return kernel


def _choose_c_block(N, H, W, Hp, Wp, Ho, Wo, Cpad, use_scratch,
                    budget_bytes=20 * 1024 * 1024):
    """Largest multiple-of-128 channel block dividing Cpad that fits VMEM."""
    m_max = Cpad // LANES
    for m in range(m_max, 0, -1):
        if m_max % m != 0:
            continue
        cblk = m * LANES
        in_b = N * H * W * cblk * 4
        out_b = N * Ho * Wo * cblk * 4
        scr_b = (N * Hp * Wp * cblk * 4) if use_scratch else 0
        # In-kernel temporaries: f32 cast of x, H-reduced intermediate, pooled.
        tmp_b = in_b + N * Ho * Wp * cblk * 4 + out_b
        # in/out blocks are double-buffered by the pipeline; scratch/temps not.
        if 2 * in_b + 2 * out_b + scr_b + tmp_b <= budget_bytes:
            return cblk
    return LANES


def pool_bn(x, gamma, beta, *, pool_type, kernel_size, stride, padding,
            eps=1e-3):
    """x: (N, C, H, W); gamma/beta: (C,). Returns (N, C, Ho, Wo) in x.dtype."""
    pool_type = pool_type.lower()
    assert pool_type in ("avg", "max")
    k, s, p = kernel_size, stride, padding
    # PyTorch pooling constraint; also guarantees every window has >=1 valid
    # element, so -inf padding never leaks into the max-pool output.
    assert p < k, "padding must be smaller than kernel_size"

    N, C, H, W = x.shape
    Ho = (H + 2 * p - k) // s + 1
    Wo = (W + 2 * p - k) // s + 1
    Hp, Wp = H + 2 * p, W + 2 * p
    use_scratch = p > 0

    Cpad = pl.cdiv(C, LANES) * LANES
    Cblk = _choose_c_block(N, H, W, Hp, Wp, Ho, Wo, Cpad, use_scratch)
    grid = (Cpad // Cblk,)

    # NCHW -> NHWC, pad channels with zeros up to a lane multiple.
    x_nhwc = jnp.transpose(x, (0, 2, 3, 1))
    if Cpad != C:
        x_nhwc = jnp.pad(x_nhwc, ((0, 0), (0, 0), (0, 0), (0, Cpad - C)))
    # gamma padded with 1, beta with 0 -> padded channels stay finite (zeros).
    g = jnp.pad(gamma.astype(jnp.float32), (0, Cpad - C), constant_values=1.0)
    b = jnp.pad(beta.astype(jnp.float32), (0, Cpad - C), constant_values=0.0)
    g = g.reshape(1, 1, 1, Cpad)
    b = b.reshape(1, 1, 1, Cpad)

    inputs = [x_nhwc]
    in_specs = [pl.BlockSpec((N, H, W, Cblk), lambda c: (0, 0, 0, c))]

    if pool_type == "avg":
        # Precomputed reciprocal of the valid-element count per output pixel
        # (depends only on Ho, Wo, k, s, p) -- replaces a full-size mask.
        cnt = np.zeros((Ho, Wo), dtype=np.float32)
        for oh in range(Ho):
            h0 = oh * s - p
            hv = min(h0 + k, H) - max(h0, 0)
            for ow in range(Wo):
                w0 = ow * s - p
                wv = min(w0 + k, W) - max(w0, 0)
                cnt[oh, ow] = hv * wv
        inv_cnt = jnp.asarray(1.0 / cnt, dtype=jnp.float32).reshape(1, Ho, Wo, 1)
        inputs.append(inv_cnt)
        in_specs.append(pl.BlockSpec((1, Ho, Wo, 1), lambda c: (0, 0, 0, 0)))

    inputs += [g, b]
    in_specs += [pl.BlockSpec((1, 1, 1, Cblk), lambda c: (0, 0, 0, c)),
                 pl.BlockSpec((1, 1, 1, Cblk), lambda c: (0, 0, 0, c))]

    out_spec = pl.BlockSpec((N, Ho, Wo, Cblk), lambda c: (0, 0, 0, c))
    scratch_shapes = ([pltpu.VMEM((N, Hp, Wp, Cblk), jnp.float32)]
                      if use_scratch else [])

    kernel = _make_pool_bn_kernel(pool_type, k, s, p, N, H, W, Ho, Wo, eps,
                                  use_scratch)

    out_nhwc = pl.pallas_call(
        kernel,
        out_shape=jax.ShapeDtypeStruct((N, Ho, Wo, Cpad), x.dtype),
        grid=grid,
        in_specs=in_specs,
        out_specs=out_spec,
        scratch_shapes=scratch_shapes,
        compiler_params=pltpu.CompilerParams(
            dimension_semantics=("parallel",),
            vmem_limit_bytes=32 * 1024 * 1024),
    )(*inputs)

    # Drop channel padding, back to NCHW.
    return jnp.transpose(out_nhwc[:, :, :, :C], (0, 3, 1, 2))


def pool_bn_reference(x, gamma, beta, *, pool_type, kernel_size, stride,
                      padding, eps=1e-3):
    """Pure-JAX reference (lax.reduce_window) for validation."""
    k, s, p = kernel_size, stride, padding
    dims = (1, 1, k, k)
    strides = (1, 1, s, s)
    pads = [(0, 0), (0, 0), (p, p), (p, p)]
    if pool_type == "max":
        pooled = jax.lax.reduce_window(x, -jnp.inf, jax.lax.max, dims, strides,
                                       pads)
    else:
        ssum = jax.lax.reduce_window(x, 0.0, jax.lax.add, dims, strides, pads)
        cnt = jax.lax.reduce_window(jnp.ones_like(x), 0.0, jax.lax.add, dims,
                                    strides, pads)
        pooled = ssum / cnt
    mean = jnp.mean(pooled, axis=(0, 2, 3), keepdims=True)
    var = jnp.mean((pooled - mean) ** 2, axis=(0, 2, 3), keepdims=True)
    y = (pooled - mean) * jax.lax.rsqrt(var + eps)
    return y * gamma.reshape(1, -1, 1, 1) + beta.reshape(1, -1, 1, 1)


if __name__ == "__main__":
    key = jax.random.PRNGKey(0)
    N, C, H, W = 2, 4, 16, 16
    x = jax.random.normal(key, (N, C, H, W), dtype=jnp.float32)

    # BatchNorm2d(C, affine=True) default init: gamma = 1, beta = 0
    gamma = jnp.ones((C,), dtype=jnp.float32)
    beta = jnp.zeros((C,), dtype=jnp.float32)

    cfg = dict(kernel_size=3, stride=1, padding=1, eps=1e-3)

    for pool_type in ("avg", "max"):
        out = pool_bn(x, gamma, beta, pool_type=pool_type, **cfg)
        out = jax.block_until_ready(out)
        ref = pool_bn_reference(x, gamma, beta, pool_type=pool_type, **cfg)
        assert out.shape == (N, C, H, W), out.shape
        assert jnp.allclose(out, ref, rtol=1e-4, atol=5e-4), (
            f"mismatch for pool_type={pool_type}")

    print("KERNEL_OK")
</pallas_src>

<mosaic_0001>
module attributes {stable_mosaic.version = 11 : i64} {
  func.func @kernel(%arg0: i32, %arg1: memref<2x16x16x128xf32, #tpu.memory_space<vmem>>, %arg2: memref<1x16x16x1xf32, #tpu.memory_space<vmem>>, %arg3: memref<1x1x1x128xf32, #tpu.memory_space<vmem>>, %arg4: memref<1x1x1x128xf32, #tpu.memory_space<vmem>>, %arg5: memref<2x16x16x128xf32, #tpu.memory_space<vmem>>, %arg6: memref<2x18x18x128xf32, #tpu.memory_space<vmem>>) attributes {dimension_semantics = [#tpu.dimension_semantics<parallel>], iteration_bounds = array<i64: 1>, scalar_prefetch = 0 : i64, scratch_operands = 1 : i64, tpu.core_type = #tpu.core_type<tc>, window_params = [{transform_indices = @transform_0, window_bounds = array<i64: 2, 16, 16, 128>}, {pipeline_mode = #tpu.pipeline_mode<synchronous>, transform_indices = @transform_1, window_bounds = array<i64: 1, 16, 16, 1>}, {transform_indices = @transform_2, window_bounds = array<i64: 1, 1, 1, 128>}, {transform_indices = @transform_3, window_bounds = array<i64: 1, 1, 1, 128>}, {transform_indices = @transform_4, window_bounds = array<i64: 2, 16, 16, 128>}]} {
    %c0 = arith.constant 0 : index
    %c0_0 = arith.constant 0 : index
    %c0_1 = arith.constant 0 : index
    %c0_2 = arith.constant 0 : index
    %0 = vector.load %arg1[%c0, %c0_0, %c0_1, %c0_2] : memref<2x16x16x128xf32, #tpu.memory_space<vmem>>, vector<2x16x16x128xf32>
    %c0_i32 = arith.constant 0 : i32
    %1 = arith.cmpi eq, %arg0, %c0_i32 : i32
    %2 = arith.extui %1 : i1 to i32
    %c0_i32_3 = arith.constant 0 : i32
    %3 = arith.cmpi ne, %2, %c0_i32_3 : i32
    scf.if %3 {
      %cst_32 = arith.constant 0.000000e+00 : f32
      %45 = vector.broadcast %cst_32 : f32 to vector<2x18x18x128xf32>
      %c0_33 = arith.constant 0 : index
      %c0_34 = arith.constant 0 : index
      %c0_35 = arith.constant 0 : index
      %c0_36 = arith.constant 0 : index
      %46 = vector.load %arg6[%c0_33, %c0_34, %c0_35, %c0_36] : memref<2x18x18x128xf32, #tpu.memory_space<vmem>>, vector<2x18x18x128xf32>
      tpu.vector_store %arg6[%c0_33, %c0_34, %c0_35, %c0_36], %45 {strides = array<i32>} : memref<2x18x18x128xf32, #tpu.memory_space<vmem>>, vector<2x18x18x128xf32>,
    } else {
    }
    %c0_4 = arith.constant 0 : index
    %c1 = arith.constant 1 : index
    %c1_5 = arith.constant 1 : index
    %c0_6 = arith.constant 0 : index
    %4 = vector.load %arg6[%c0_4, %c1, %c1_5, %c0_6] : memref<2x18x18x128xf32, #tpu.memory_space<vmem>>, vector<2x16x16x128xf32>
    tpu.vector_store %arg6[%c0_4, %c1, %c1_5, %c0_6], %0 {strides = array<i32>} : memref<2x18x18x128xf32, #tpu.memory_space<vmem>>, vector<2x16x16x128xf32>,
    %c0_7 = arith.constant 0 : index
    %c0_8 = arith.constant 0 : index
    %c0_9 = arith.constant 0 : index
    %c0_10 = arith.constant 0 : index
    %5 = vector.load %arg6[%c0_7, %c0_8, %c0_9, %c0_10] : memref<2x18x18x128xf32, #tpu.memory_space<vmem>>, vector<2x18x18x128xf32>
    %6 = vector.extract_strided_slice %5 {offsets = [0, 0, 0, 0], sizes = [2, 16, 18, 128], strides = [1, 1, 1, 1]} : vector<2x18x18x128xf32> to vector<2x16x18x128xf32>
    %7 = vector.extract_strided_slice %5 {offsets = [0, 1, 0, 0], sizes = [2, 16, 18, 128], strides = [1, 1, 1, 1]} : vector<2x18x18x128xf32> to vector<2x16x18x128xf32>
    %8 = arith.addf %6, %7 : vector<2x16x18x128xf32>
    %9 = vector.extract_strided_slice %5 {offsets = [0, 2, 0, 0], sizes = [2, 16, 18, 128], strides = [1, 1, 1, 1]} : vector<2x18x18x128xf32> to vector<2x16x18x128xf32>
    %10 = arith.addf %8, %9 : vector<2x16x18x128xf32>
    %11 = vector.extract_strided_slice %10 {offsets = [0, 0, 0, 0], sizes = [2, 16, 16, 128], strides = [1, 1, 1, 1]} : vector<2x16x18x128xf32> to vector<2x16x16x128xf32>
    %12 = vector.extract_strided_slice %10 {offsets = [0, 0, 1, 0], sizes = [2, 16, 16, 128], strides = [1, 1, 1, 1]} : vector<2x16x18x128xf32> to vector<2x16x16x128xf32>
    %13 = arith.addf %11, %12 : vector<2x16x16x128xf32>
    %14 = vector.extract_strided_slice %10 {offsets = [0, 0, 2, 0], sizes = [2, 16, 16, 128], strides = [1, 1, 1, 1]} : vector<2x16x18x128xf32> to vector<2x16x16x128xf32>
    %15 = arith.addf %13, %14 : vector<2x16x16x128xf32>
    %c0_11 = arith.constant 0 : index
    %c0_12 = arith.constant 0 : index
    %c0_13 = arith.constant 0 : index
    %c0_14 = arith.constant 0 : index
    %16 = vector.load %arg2[%c0_11, %c0_12, %c0_13, %c0_14] : memref<1x16x16x1xf32, #tpu.memory_space<vmem>>, vector<1x16x16x1xf32>
    %17 = vector.broadcast %16 : vector<1x16x16x1xf32> to vector<2x16x16x128xf32>
    %18 = arith.mulf %15, %17 : vector<2x16x16x128xf32>
    %cst = arith.constant dense<0.000000e+00> : vector<128xf32>
    %19 = vector.multi_reduction <add>, %18, %cst [0, 1, 2] : vector<2x16x16x128xf32> to vector<128xf32>
    %20 = vector.shape_cast %19 : vector<128xf32> to vector<1x1x1x128xf32>
    %21 = arith.mulf %18, %18 : vector<2x16x16x128xf32>
    %cst_15 = arith.constant dense<0.000000e+00> : vector<128xf32>
    %22 = vector.multi_reduction <add>, %21, %cst_15 [0, 1, 2] : vector<2x16x16x128xf32> to vector<128xf32>
    %23 = vector.shape_cast %22 : vector<128xf32> to vector<1x1x1x128xf32>
    %cst_16 = arith.constant 0.001953125 : f32
    %24 = vector.broadcast %cst_16 : f32 to vector<1x1x1x128xf32>
    %25 = arith.mulf %20, %24 : vector<1x1x1x128xf32>
    %cst_17 = arith.constant 0.001953125 : f32
    %26 = vector.broadcast %cst_17 : f32 to vector<1x1x1x128xf32>
    %27 = arith.mulf %23, %26 : vector<1x1x1x128xf32>
    %28 = arith.mulf %25, %25 : vector<1x1x1x128xf32>
    %29 = arith.subf %27, %28 : vector<1x1x1x128xf32>
    %cst_18 = arith.constant 0.000000e+00 : f32
    %30 = vector.broadcast %cst_18 : f32 to vector<1x1x1x128xf32>
    %31 = arith.maximumf %29, %30 : vector<1x1x1x128xf32>
    %cst_19 = arith.constant 1.000000e-03 : f32
    %32 = vector.broadcast %cst_19 : f32 to vector<1x1x1x128xf32>
    %33 = arith.addf %31, %32 : vector<1x1x1x128xf32>
    %34 = math.rsqrt %33 : vector<1x1x1x128xf32>
    %c0_20 = arith.constant 0 : index
    %c0_21 = arith.constant 0 : index
    %c0_22 = arith.constant 0 : index
    %c0_23 = arith.constant 0 : index
    %35 = vector.load %arg3[%c0_20, %c0_21, %c0_22, %c0_23] : memref<1x1x1x128xf32, #tpu.memory_space<vmem>>, vector<1x1x1x128xf32>
    %36 = arith.mulf %35, %34 : vector<1x1x1x128xf32>
    %c0_24 = arith.constant 0 : index
    %c0_25 = arith.constant 0 : index
    %c0_26 = arith.constant 0 : index
    %c0_27 = arith.constant 0 : index
    %37 = vector.load %arg4[%c0_24, %c0_25, %c0_26, %c0_27] : memref<1x1x1x128xf32, #tpu.memory_space<vmem>>, vector<1x1x1x128xf32>
    %38 = arith.mulf %25, %36 : vector<1x1x1x128xf32>
    %39 = arith.subf %37, %38 : vector<1x1x1x128xf32>
    %40 = vector.broadcast %36 : vector<1x1x1x128xf32> to vector<2x16x16x128xf32>
    %41 = arith.mulf %18, %40 : vector<2x16x16x128xf32>
    %42 = vector.broadcast %39 : vector<1x1x1x128xf32> to vector<2x16x16x128xf32>
    %43 = arith.addf %41, %42 : vector<2x16x16x128xf32>
    %c0_28 = arith.constant 0 : index
    %c0_29 = arith.constant 0 : index
    %c0_30 = arith.constant 0 : index
    %c0_31 = arith.constant 0 : index
    %44 = vector.load %arg5[%c0_28, %c0_29, %c0_30, %c0_31] : memref<2x16x16x128xf32, #tpu.memory_space<vmem>>, vector<2x16x16x128xf32>
    tpu.vector_store %arg5[%c0_28, %c0_29, %c0_30, %c0_31], %43 {strides = array<i32>} : memref<2x16x16x128xf32, #tpu.memory_space<vmem>>, vector<2x16x16x128xf32>,
    return
  }
  func.func @transform_0(%arg0: i32) -> (i32, i32, i32, i32) {
    %c0_i32 = arith.constant 0 : i32
    %c0_i32_0 = arith.constant 0 : i32
    %c0_i32_1 = arith.constant 0 : i32
    %c0_i32_2 = arith.constant 0 : i32
    return %c0_i32, %c0_i32_0, %c0_i32_1, %arg0 : i32, i32, i32, i32
  }
  func.func @transform_1(%arg0: i32) -> (i32, i32, i32, i32) {
    %c0_i32 = arith.constant 0 : i32
    %c0_i32_0 = arith.constant 0 : i32
    %c0_i32_1 = arith.constant 0 : i32
    %c0_i32_2 = arith.constant 0 : i32
    %c0_i32_3 = arith.constant 0 : i32
    return %c0_i32, %c0_i32_0, %c0_i32_1, %c0_i32_2 : i32, i32, i32, i32
  }
  func.func @transform_2(%arg0: i32) -> (i32, i32, i32, i32) {
    %c0_i32 = arith.constant 0 : i32
    %c0_i32_0 = arith.constant 0 : i32
    %c0_i32_1 = arith.constant 0 : i32
    %c0_i32_2 = arith.constant 0 : i32
    return %c0_i32, %c0_i32_0, %c0_i32_1, %arg0 : i32, i32, i32, i32
  }
  func.func @transform_3(%arg0: i32) -> (i32, i32, i32, i32) {
    %c0_i32 = arith.constant 0 : i32
    %c0_i32_0 = arith.constant 0 : i32
    %c0_i32_1 = arith.constant 0 : i32
    %c0_i32_2 = arith.constant 0 : i32
    return %c0_i32, %c0_i32_0, %c0_i32_1, %arg0 : i32, i32, i32, i32
  }
  func.func @transform_4(%arg0: i32) -> (i32, i32, i32, i32) {
    %c0_i32 = arith.constant 0 : i32
    %c0_i32_0 = arith.constant 0 : i32
    %c0_i32_1 = arith.constant 0 : i32
    %c0_i32_2 = arith.constant 0 : i32
    return %c0_i32, %c0_i32_0, %c0_i32_1, %arg0 : i32, i32, i32, i32
  }
}

</mosaic_0001>

<llo_original>
// kernel: tpu_custom_call.1
$region0: #{tpu_custom_call.1}
  #allocation0 [shape = 'u32[]', space=smem, size = 0x4, offset = 0x4, fixed_abs, tag = 'smem constant byte address 0x4 - core index']
  #allocation1 [shape = 'u32[72,128]{1,0:T(1,128)}', space=vmem, size = 0x9000, scoped, tag = 'internal scratch']
  #allocation2 [shape = 'f32[2,18,18,128]{3,2,1,0:T(8,128)}', space=vmem, size = 0x6c000, scoped, tag = 'scratch operand']
  %s0 = inlined_call_operand.hbm [shape: f32[2,16,16,128], index: 0, kind: input, shape index: {}]
  %s1 = inlined_call_operand.vmem [shape: f32[1,16,16,1], index: 1, kind: input, shape index: {}]
  %s2 = inlined_call_operand.vmem [shape: f32[1,1,1,128], index: 2, kind: input, shape index: {}]
  %s3 = inlined_call_operand.vmem [shape: f32[1,1,1,128], index: 3, kind: input, shape index: {}]
  %s4 = inlined_call_operand.hbm [shape: f32[2,16,16,128], index: 4, kind: output, shape index: {}]
  %s5 = sld [smem:[#allocation0]]
  $region34: #{tpu_custom_call.1} parent=0
    _
  %s7 = ssub.s32 1, %s5
  %s8 = scalar_select 0, %s7, %s5
  $region1: #{tpu_custom_call.1} parent=0
    #allocation3 [shape = 'u8[262144]{0}', space=vmem, size = 0x40000, scoped, tag = 'input window, operand 0, single buffered']
    #allocation4 [shape = 's32[1]{0}', space=sflag, size = 0x4, scoped, tag = 'scoped memory for tpu_custom_call.1']
    #allocation5 [shape = 's32[1]{0}', space=sflag, size = 0x4, scoped, tag = 'scoped memory for tpu_custom_call.1']
    #allocation6 [shape = 'u8[262144]{0}', space=vmem, size = 0x40000, scoped, tag = 'output window, operand 0, single buffered']
    %9 = vsyncpa [#allocation4], 0
    %10 = vsyncpa [#allocation5], 0
    // Predicated region
    $region2: #{tpu_custom_call.1} parent=1 // pred_check
      _
    $region3: #{tpu_custom_call.1} parent=1 // pred_check_branch
      %12 = sbr.rel (0) target = $region5
    $region4: #{tpu_custom_call.1} parent=1 // pred_region
      %14 = vsyncadd [#allocation4], 0
      %s15 = sshll.u32 %s0, 4
      %s16 = int_to_ptr.hbm [resolvable:$true] %s15
      %s17 = sshll.u32 [#allocation3], 4
      %s18 = int_to_ptr.vmem [resolvable:$true] %s17
      %23 = dma.hbm_to_vmem [thread:$0]  %s16, 8192, %s18, [#allocation4], 128, 128, 8
    $region5: #{tpu_custom_call.1} parent=1 // pred_fallthru
      _
    // Predicated region
    $region6: #{tpu_custom_call.1} parent=1 // pred_check
      _
    $region7: #{tpu_custom_call.1} parent=1 // pred_check_branch
      %25 = sbr.rel (0) target = $region9
    $region8: #{tpu_custom_call.1} parent=1 // pred_region
      _
    $region9: #{tpu_custom_call.1} parent=1 // pred_fallthru
      _
    // Predicated region
    $region10: #{tpu_custom_call.1} parent=1 // pred_check
      _
    $region11: #{tpu_custom_call.1} parent=1 // pred_check_branch
      %27 = sbr.rel (0) target = $region13
    $region12: #{tpu_custom_call.1} parent=1 // pred_region
      _
    $region13: #{tpu_custom_call.1} parent=1 // pred_fallthru
      _
    // Predicated region
    $region14: #{tpu_custom_call.1} parent=1 // pred_check
      _
    $region15: #{tpu_custom_call.1} parent=1 // pred_check_branch
      %29 = sbr.rel (0) target = $region17
    $region16: #{tpu_custom_call.1} parent=1 // pred_region
      _
    $region17: #{tpu_custom_call.1} parent=1 // pred_fallthru
      _
    // Predicated region
    $region18: #{tpu_custom_call.1} parent=1 // pred_check
      _
    $region19: #{tpu_custom_call.1} parent=1 // pred_check_branch
      %31 = sbr.rel (0) target = $region21
    $region20: #{tpu_custom_call.1} parent=1 // pred_region
      %33 = dma.done [#allocation4], 8192
    $region21: #{tpu_custom_call.1} parent=1 // pred_fallthru
      _
    %v34 = vld [vmem:[#allocation3] sm:$0xff]
    %v35 = vld [vmem:[#allocation3 + $0x8] sm:$0xff]
    %v36 = vld [vmem:[#allocation3 + $0x10] sm:$0xff]
    %v37 = vld [vmem:[#allocation3 + $0x18] sm:$0xff]
    %v38 = vld [vmem:[#allocation3 + $0x20] sm:$0xff]
    %v39 = vld [vmem:[#allocation3 + $0x28] sm:$0xff]
    %v40 = vld [vmem:[#allocation3 + $0x30] sm:$0xff]
    %v41 = vld [vmem:[#allocation3 + $0x38] sm:$0xff]
    %v42 = vld [vmem:[#allocation3 + $0x40] sm:$0xff]
    %v43 = vld [vmem:[#allocation3 + $0x48] sm:$0xff]
    %v44 = vld [vmem:[#allocation3 + $0x50] sm:$0xff]
    %v45 = vld [vmem:[#allocation3 + $0x58] sm:$0xff]
    %v46 = vld [vmem:[#allocation3 + $0x60] sm:$0xff]
    %v47 = vld [vmem:[#allocation3 + $0x68] sm:$0xff]
    %v48 = vld [vmem:[#allocation3 + $0x70] sm:$0xff]
    %v49 = vld [vmem:[#allocation3 + $0x78] sm:$0xff]
    %v50 = vld [vmem:[#allocation3 + $0x80] sm:$0xff]
    %v51 = vld [vmem:[#allocation3 + $0x88] sm:$0xff]
    %v52 = vld [vmem:[#allocation3 + $0x90] sm:$0xff]
    %v53 = vld [vmem:[#allocation3 + $0x98] sm:$0xff]
    %v54 = vld [vmem:[#allocation3 + $0xa0] sm:$0xff]
    %v55 = vld [vmem:[#allocation3 + $0xa8] sm:$0xff]
    %v56 = vld [vmem:[#allocation3 + $0xb0] sm:$0xff]
    %v57 = vld [vmem:[#allocation3 + $0xb8] sm:$0xff]
    %v58 = vld [vmem:[#allocation3 + $0xc0] sm:$0xff]
    %v59 = vld [vmem:[#allocation3 + $0xc8] sm:$0xff]
    %v60 = vld [vmem:[#allocation3 + $0xd0] sm:$0xff]
    %v61 = vld [vmem:[#allocation3 + $0xd8] sm:$0xff]
    %v62 = vld [vmem:[#allocation3 + $0xe0] sm:$0xff]
    %v63 = vld [vmem:[#allocation3 + $0xe8] sm:$0xff]
    %v64 = vld [vmem:[#allocation3 + $0xf0] sm:$0xff]
    %v65 = vld [vmem:[#allocation3 + $0xf8] sm:$0xff]
    %v66 = vld [vmem:[#allocation3 + $0x100] sm:$0xff]
    %v67 = vld [vmem:[#allocation3 + $0x108] sm:$0xff]
    %v68 = vld [vmem:[#allocation3 + $0x110] sm:$0xff]
    %v69 = vld [vmem:[#allocation3 + $0x118] sm:$0xff]
    %v70 = vld [vmem:[#allocation3 + $0x120] sm:$0xff]
    %v71 = vld [vmem:[#allocation3 + $0x128] sm:$0xff]
    %v72 = vld [vmem:[#allocation3 + $0x130] sm:$0xff]
    %v73 = vld [vmem:[#allocation3 + $0x138] sm:$0xff]
    %v74 = vld [vmem:[#allocation3 + $0x140] sm:$0xff]
    %v75 = vld [vmem:[#allocation3 + $0x148] sm:$0xff]
    %v76 = vld [vmem:[#allocation3 + $0x150] sm:$0xff]
    %v77 = vld [vmem:[#allocation3 + $0x158] sm:$0xff]
    %v78 = vld [vmem:[#allocation3 + $0x160] sm:$0xff]
    %v79 = vld [vmem:[#allocation3 + $0x168] sm:$0xff]
    %v80 = vld [vmem:[#allocation3 + $0x170] sm:$0xff]
    %v81 = vld [vmem:[#allocation3 + $0x178] sm:$0xff]
    %v82 = vld [vmem:[#allocation3 + $0x180] sm:$0xff]
    %v83 = vld [vmem:[#allocation3 + $0x188] sm:$0xff]
    %v84 = vld [vmem:[#allocation3 + $0x190] sm:$0xff]
    %v85 = vld [vmem:[#allocation3 + $0x198] sm:$0xff]
    %v86 = vld [vmem:[#allocation3 + $0x1a0] sm:$0xff]
    %v87 = vld [vmem:[#allocation3 + $0x1a8] sm:$0xff]
    %v88 = vld [vmem:[#allocation3 + $0x1b0] sm:$0xff]
    %v89 = vld [vmem:[#allocation3 + $0x1b8] sm:$0xff]
    %v90 = vld [vmem:[#allocation3 + $0x1c0] sm:$0xff]
    %v91 = vld [vmem:[#allocation3 + $0x1c8] sm:$0xff]
    %v92 = vld [vmem:[#allocation3 + $0x1d0] sm:$0xff]
    %v93 = vld [vmem:[#allocation3 + $0x1d8] sm:$0xff]
    %v94 = vld [vmem:[#allocation3 + $0x1e0] sm:$0xff]
    %v95 = vld [vmem:[#allocation3 + $0x1e8] sm:$0xff]
    %v96 = vld [vmem:[#allocation3 + $0x1f0] sm:$0xff]
    %v97 = vld [vmem:[#allocation3 + $0x1f8] sm:$0xff]
    %p98 = scmp.eq.s32.totalorder 0, 0
    // Predicated region
    $region22: #{tpu_custom_call.1} parent=1 // pred_check
      %p99 = pneg %p98
    $region23: #{tpu_custom_call.1} parent=1 // pred_check_branch
      %101 = sbr.rel (%p99) target = $region25
    $region24: #{tpu_custom_call.1} parent=1 // pred_region
      %102 = vst [vmem:[#allocation2] sm:$0xff] 0.0
      %103 = vst [vmem:[#allocation2 + $0x8] sm:$0xff] 0.0
      %104 = vst [vmem:[#allocation2 + $0x10] sm:$0x3] 0.0
      %105 = vst [vmem:[#allocation2 + $0x18] sm:$0xff] 0.0
      %106 = vst [vmem:[#allocation2 + $0x20] sm:$0xff] 0.0
      %107 = vst [vmem:[#allocation2 + $0x28] sm:$0x3] 0.0
      %108 = vst [vmem:[#allocation2 + $0x30] sm:$0xff] 0.0
      %109 = vst [vmem:[#allocation2 + $0x38] sm:$0xff] 0.0
      %110 = vst [vmem:[#allocation2 + $0x40] sm:$0x3] 0.0
      %111 = vst [vmem:[#allocation2 + $0x48] sm:$0xff] 0.0
      %112 = vst [vmem:[#allocation2 + $0x50] sm:$0xff] 0.0
      %113 = vst [vmem:[#allocation2 + $0x58] sm:$0x3] 0.0
      %114 = vst [vmem:[#allocation2 + $0x60] sm:$0xff] 0.0
      %115 = vst [vmem:[#allocation2 + $0x68] sm:$0xff] 0.0
      %116 = vst [vmem:[#allocation2 + $0x70] sm:$0x3] 0.0
      %117 = vst [vmem:[#allocation2 + $0x78] sm:$0xff] 0.0
      %118 = vst [vmem:[#allocation2 + $0x80] sm:$0xff] 0.0
      %119 = vst [vmem:[#allocation2 + $0x88] sm:$0x3] 0.0
      %120 = vst [vmem:[#allocation2 + $0x90] sm:$0xff] 0.0
      %121 = vst [vmem:[#allocation2 + $0x98] sm:$0xff] 0.0
      %122 = vst [vmem:[#allocation2 + $0xa0] sm:$0x3] 0.0
      %123 = vst [vmem:[#allocation2 + $0xa8] sm:$0xff] 0.0
      %124 = vst [vmem:[#allocation2 + $0xb0] sm:$0xff] 0.0
      %125 = vst [vmem:[#allocation2 + $0xb8] sm:$0x3] 0.0
      %126 = vst [vmem:[#allocation2 + $0xc0] sm:$0xff] 0.0
      %127 = vst [vmem:[#allocation2 + $0xc8] sm:$0xff] 0.0
      %128 = vst [vmem:[#allocation2 + $0xd0] sm:$0x3] 0.0
      %129 = vst [vmem:[#allocation2 + $0xd8] sm:$0xff] 0.0
      %130 = vst [vmem:[#allocation2 + $0xe0] sm:$0xff] 0.0
      %131 = vst [vmem:[#allocation2 + $0xe8] sm:$0x3] 0.0
      %132 = vst [vmem:[#allocation2 + $0xf0] sm:$0xff] 0.0
      %133 = vst [vmem:[#allocation2 + $0xf8] sm:$0xff] 0.0
      %134 = vst [vmem:[#allocation2 + $0x100] sm:$0x3] 0.0
      %135 = vst [vmem:[#allocation2 + $0x108] sm:$0xff] 0.0
      %136 = vst [vmem:[#allocation2 + $0x110] sm:$0xff] 0.0
      %137 = vst [vmem:[#allocation2 + $0x118] sm:$0x3] 0.0
      %138 = vst [vmem:[#allocation2 + $0x120] sm:$0xff] 0.0
      %139 = vst [vmem:[#allocation2 + $0x128] sm:$0xff] 0.0
      %140 = vst [vmem:[#allocation2 + $0x130] sm:$0x3] 0.0
      %141 = vst [vmem:[#allocation2 + $0x138] sm:$0xff] 0.0
      %142 = vst [vmem:[#allocation2 + $0x140] sm:$0xff] 0.0
      %143 = vst [vmem:[#allocation2 + $0x148] sm:$0x3] 0.0
      %144 = vst [vmem:[#allocation2 + $0x150] sm:$0xff] 0.0
      %145 = vst [vmem:[#allocation2 + $0x158] sm:$0xff] 0.0
      %146 = vst [vmem:[#allocation2 + $0x160] sm:$0x3] 0.0
      %147 = vst [vmem:[#allocation2 + $0x168] sm:$0xff] 0.0
      %148 = vst [vmem:[#allocation2 + $0x170] sm:$0xff] 0.0
      %149 = vst [vmem:[#allocation2 + $0x178] sm:$0x3] 0.0
      %150 = vst [vmem:[#allocation2 + $0x180] sm:$0xff] 0.0
      %151 = vst [vmem:[#allocation2 + $0x188] sm:$0xff] 0.0
      %152 = vst [vmem:[#allocation2 + $0x190] sm:$0x3] 0.0
      %153 = vst [vmem:[#allocation2 + $0x198] sm:$0xff] 0.0
      %154 = vst [vmem:[#allocation2 + $0x1a0] sm:$0xff] 0.0
      %155 = vst [vmem:[#allocation2 + $0x1a8] sm:$0x3] 0.0
      %156 = vst [vmem:[#allocation2 + $0x1b0] sm:$0xff] 0.0
      %157 = vst [vmem:[#allocation2 + $0x1b8] sm:$0xff] 0.0
      %158 = vst [vmem:[#allocation2 + $0x1c0] sm:$0x3] 0.0
      %159 = vst [vmem:[#allocation2 + $0x1c8] sm:$0xff] 0.0
      %160 = vst [vmem:[#allocation2 + $0x1d0] sm:$0xff] 0.0
      %161 = vst [vmem:[#allocation2 + $0x1d8] sm:$0x3] 0.0
      %162 = vst [vmem:[#allocation2 + $0x1e0] sm:$0xff] 0.0
      %163 = vst [vmem:[#allocation2 + $0x1e8] sm:$0xff] 0.0
      %164 = vst [vmem:[#allocation2 + $0x1f0] sm:$0x3] 0.0
      %165 = vst [vmem:[#allocation2 + $0x1f8] sm:$0xff] 0.0
      %166 = vst [vmem:[#allocation2 + $0x200] sm:$0xff] 0.0
      %167 = vst [vmem:[#allocation2 + $0x208] sm:$0x3] 0.0
      %168 = vst [vmem:[#allocation2 + $0x210] sm:$0xff] 0.0
      %169 = vst [vmem:[#allocation2 + $0x218] sm:$0xff] 0.0
      %170 = vst [vmem:[#allocation2 + $0x220] sm:$0x3] 0.0
      %171 = vst [vmem:[#allocation2 + $0x228] sm:$0xff] 0.0
      %172 = vst [vmem:[#allocation2 + $0x230] sm:$0xff] 0.0
      %173 = vst [vmem:[#allocation2 + $0x238] sm:$0x3] 0.0
      %174 = vst [vmem:[#allocation2 + $0x240] sm:$0xff] 0.0
      %175 = vst [vmem:[#allocation2 + $0x248] sm:$0xff] 0.0
      %176 = vst [vmem:[#allocation2 + $0x250] sm:$0x3] 0.0
      %177 = vst [vmem:[#allocation2 + $0x258] sm:$0xff] 0.0
      %178 = vst [vmem:[#allocation2 + $0x260] sm:$0xff] 0.0
      %179 = vst [vmem:[#allocation2 + $0x268] sm:$0x3] 0.0
      %180 = vst [vmem:[#allocation2 + $0x270] sm:$0xff] 0.0
      %181 = vst [vmem:[#allocation2 + $0x278] sm:$0xff] 0.0
      %182 = vst [vmem:[#allocation2 + $0x280] sm:$0x3] 0.0
      %183 = vst [vmem:[#allocation2 + $0x288] sm:$0xff] 0.0
      %184 = vst [vmem:[#allocation2 + $0x290] sm:$0xff] 0.0
      %185 = vst [vmem:[#allocation2 + $0x298] sm:$0x3] 0.0
      %186 = vst [vmem:[#allocation2 + $0x2a0] sm:$0xff] 0.0
      %187 = vst [vmem:[#allocation2 + $0x2a8] sm:$0xff] 0.0
      %188 = vst [vmem:[#allocation2 + $0x2b0] sm:$0x3] 0.0
      %189 = vst [vmem:[#allocation2 + $0x2b8] sm:$0xff] 0.0
      %190 = vst [vmem:[#allocation2 + $0x2c0] sm:$0xff] 0.0
      %191 = vst [vmem:[#allocation2 + $0x2c8] sm:$0x3] 0.0
      %192 = vst [vmem:[#allocation2 + $0x2d0] sm:$0xff] 0.0
      %193 = vst [vmem:[#allocation2 + $0x2d8] sm:$0xff] 0.0
      %194 = vst [vmem:[#allocation2 + $0x2e0] sm:$0x3] 0.0
      %195 = vst [vmem:[#allocation2 + $0x2e8] sm:$0xff] 0.0
      %196 = vst [vmem:[#allocation2 + $0x2f0] sm:$0xff] 0.0
      %197 = vst [vmem:[#allocation2 + $0x2f8] sm:$0x3] 0.0
      %198 = vst [vmem:[#allocation2 + $0x300] sm:$0xff] 0.0
      %199 = vst [vmem:[#allocation2 + $0x308] sm:$0xff] 0.0
      %200 = vst [vmem:[#allocation2 + $0x310] sm:$0x3] 0.0
      %201 = vst [vmem:[#allocation2 + $0x318] sm:$0xff] 0.0
      %202 = vst [vmem:[#allocation2 + $0x320] sm:$0xff] 0.0
      %203 = vst [vmem:[#allocation2 + $0x328] sm:$0x3] 0.0
      %204 = vst [vmem:[#allocation2 + $0x330] sm:$0xff] 0.0
      %205 = vst [vmem:[#allocation2 + $0x338] sm:$0xff] 0.0
      %206 = vst [vmem:[#allocation2 + $0x340] sm:$0x3] 0.0
      %207 = vst [vmem:[#allocation2 + $0x348] sm:$0xff] 0.0
      %208 = vst [vmem:[#allocation2 + $0x350] sm:$0xff] 0.0
      %209 = vst [vmem:[#allocation2 + $0x358] sm:$0x3] 0.0
    $region25: #{tpu_custom_call.1} parent=1 // pred_fallthru
      _
    %s210 = scalar_lea.vmem [#allocation2], 24
    %211 = vst [vmem:[%s210 + $0x1] sm:$0xff] %v34
    %212 = vst [vmem:[%s210 + $0x9] sm:$0xff] %v35
    %213 = vst [vmem:[%s210 + $0x19] sm:$0xff] %v36
    %214 = vst [vmem:[%s210 + $0x21] sm:$0xff] %v37
    %215 = vst [vmem:[%s210 + $0x31] sm:$0xff] %v38
    %216 = vst [vmem:[%s210 + $0x39] sm:$0xff] %v39
    %217 = vst [vmem:[%s210 + $0x49] sm:$0xff] %v40
    %218 = vst [vmem:[%s210 + $0x51] sm:$0xff] %v41
    %219 = vst [vmem:[%s210 + $0x61] sm:$0xff] %v42
    %220 = vst [vmem:[%s210 + $0x69] sm:$0xff] %v43
    %221 = vst [vmem:[%s210 + $0x79] sm:$0xff] %v44
    %222 = vst [vmem:[%s210 + $0x81] sm:$0xff] %v45
    %223 = vst [vmem:[%s210 + $0x91] sm:$0xff] %v46
    %224 = vst [vmem:[%s210 + $0x99] sm:$0xff] %v47
    %225 = vst [vmem:[%s210 + $0xa9] sm:$0xff] %v48
    %226 = vst [vmem:[%s210 + $0xb1] sm:$0xff] %v49
    %227 = vst [vmem:[%s210 + $0xc1] sm:$0xff] %v50
    %228 = vst [vmem:[%s210 + $0xc9] sm:$0xff] %v51
    %229 = vst [vmem:[%s210 + $0xd9] sm:$0xff] %v52
    %230 = vst [vmem:[%s210 + $0xe1] sm:$0xff] %v53
    %231 = vst [vmem:[%s210 + $0xf1] sm:$0xff] %v54
    %232 = vst [vmem:[%s210 + $0xf9] sm:$0xff] %v55
    %233 = vst [vmem:[%s210 + $0x109] sm:$0xff] %v56
    %234 = vst [vmem:[%s210 + $0x111] sm:$0xff] %v57
    %235 = vst [vmem:[%s210 + $0x121] sm:$0xff] %v58
    %236 = vst [vmem:[%s210 + $0x129] sm:$0xff] %v59
    %237 = vst [vmem:[%s210 + $0x139] sm:$0xff] %v60
    %238 = vst [vmem:[%s210 + $0x141] sm:$0xff] %v61
    %239 = vst [vmem:[%s210 + $0x151] sm:$0xff] %v62
    %240 = vst [vmem:[%s210 + $0x159] sm:$0xff] %v63
    %241 = vst [vmem:[%s210 + $0x169] sm:$0xff] %v64
    %242 = vst [vmem:[%s210 + $0x171] sm:$0xff] %v65
    %243 = vst [vmem:[%s210 + $0x1b1] sm:$0xff] %v66
    %244 = vst [vmem:[%s210 + $0x1b9] sm:$0xff] %v67
    %245 = vst [vmem:[%s210 + $0x1c9] sm:$0xff] %v68
    %246 = vst [vmem:[%s210 + $0x1d1] sm:$0xff] %v69
    %247 = vst [vmem:[%s210 + $0x1e1] sm:$0xff] %v70
    %248 = vst [vmem:[%s210 + $0x1e9] sm:$0xff] %v71
    %249 = vst [vmem:[%s210 + $0x1f9] sm:$0xff] %v72
    %250 = vst [vmem:[%s210 + $0x201] sm:$0xff] %v73
    %251 = vst [vmem:[%s210 + $0x211] sm:$0xff] %v74
    %252 = vst [vmem:[%s210 + $0x219] sm:$0xff] %v75
    %253 = vst [vmem:[%s210 + $0x229] sm:$0xff] %v76
    %254 = vst [vmem:[%s210 + $0x231] sm:$0xff] %v77
    %255 = vst [vmem:[%s210 + $0x241] sm:$0xff] %v78
    %256 = vst [vmem:[%s210 + $0x249] sm:$0xff] %v79
    %257 = vst [vmem:[%s210 + $0x259] sm:$0xff] %v80
    %258 = vst [vmem:[%s210 + $0x261] sm:$0xff] %v81
    %259 = vst [vmem:[%s210 + $0x271] sm:$0xff] %v82
    %260 = vst [vmem:[%s210 + $0x279] sm:$0xff] %v83
    %261 = vst [vmem:[%s210 + $0x289] sm:$0xff] %v84
    %262 = vst [vmem:[%s210 + $0x291] sm:$0xff] %v85
    %263 = vst [vmem:[%s210 + $0x2a1] sm:$0xff] %v86
    %264 = vst [vmem:[%s210 + $0x2a9] sm:$0xff] %v87
    %265 = vst [vmem:[%s210 + $0x2b9] sm:$0xff] %v88
    %266 = vst [vmem:[%s210 + $0x2c1] sm:$0xff] %v89
    %267 = vst [vmem:[%s210 + $0x2d1] sm:$0xff] %v90
    %268 = vst [vmem:[%s210 + $0x2d9] sm:$0xff] %v91
    %269 = vst [vmem:[%s210 + $0x2e9] sm:$0xff] %v92
    %270 = vst [vmem:[%s210 + $0x2f1] sm:$0xff] %v93
    %271 = vst [vmem:[%s210 + $0x301] sm:$0xff] %v94
    %272 = vst [vmem:[%s210 + $0x309] sm:$0xff] %v95
    %273 = vst [vmem:[%s210 + $0x319] sm:$0xff] %v96
    %274 = vst [vmem:[%s210 + $0x321] sm:$0xff] %v97
    %v275 = vld [vmem:[#allocation2] sm:$0xff]
    %v276 = vld [vmem:[#allocation2 + $0x8] sm:$0xff]
    %v277 = vld [vmem:[#allocation2 + $0x10] sm:$0x3]
    %v278 = vld [vmem:[#allocation2 + $0x18] sm:$0xff]
    %v279 = vld [vmem:[#allocation2 + $0x20] sm:$0xff]
    %v280 = vld [vmem:[#allocation2 + $0x28] sm:$0x3]
    %v281 = vld [vmem:[#allocation2 + $0x30] sm:$0xff]
    %v282 = vld [vmem:[#allocation2 + $0x38] sm:$0xff]
    %v283 = vld [vmem:[#allocation2 + $0x40] sm:$0x3]
    %v284 = vld [vmem:[#allocation2 + $0x48] sm:$0xff]
    %v285 = vld [vmem:[#allocation2 + $0x50] sm:$0xff]
    %v286 = vld [vmem:[#allocation2 + $0x58] sm:$0x3]
    %v287 = vld [vmem:[#allocation2 + $0x60] sm:$0xff]
    %v288 = vld [vmem:[#allocation2 + $0x68] sm:$0xff]
    %v289 = vld [vmem:[#allocation2 + $0x70] sm:$0x3]
    %v290 = vld [vmem:[#allocation2 + $0x78] sm:$0xff]
    %v291 = vld [vmem:[#allocation2 + $0x80] sm:$0xff]
    %v292 = vld [vmem:[#allocation2 + $0x88] sm:$0x3]
    %v293 = vld [vmem:[#allocation2 + $0x90] sm:$0xff]
    %v294 = vld [vmem:[#allocation2 + $0x98] sm:$0xff]
    %v295 = vld [vmem:[#allocation2 + $0xa0] sm:$0x3]
    %v296 = vld [vmem:[#allocation2 + $0xa8] sm:$0xff]
    %v297 = vld [vmem:[#allocation2 + $0xb0] sm:$0xff]
    %v298 = vld [vmem:[#allocation2 + $0xb8] sm:$0x3]
    %v299 = vld [vmem:[#allocation2 + $0xc0] sm:$0xff]
    %v300 = vld [vmem:[#allocation2 + $0xc8] sm:$0xff]
    %v301 = vld [vmem:[#allocation2 + $0xd0] sm:$0x3]
    %v302 = vld [vmem:[#allocation2 + $0xd8] sm:$0xff]
    %v303 = vld [vmem:[#allocation2 + $0xe0] sm:$0xff]
    %v304 = vld [vmem:[#allocation2 + $0xe8] sm:$0x3]
    %v305 = vld [vmem:[#allocation2 + $0xf0] sm:$0xff]
    %v306 = vld [vmem:[#allocation2 + $0xf8] sm:$0xff]
    %v307 = vld [vmem:[#allocation2 + $0x100] sm:$0x3]
    %v308 = vld [vmem:[#allocation2 + $0x108] sm:$0xff]
    %v309 = vld [vmem:[#allocation2 + $0x110] sm:$0xff]
    %v310 = vld [vmem:[#allocation2 + $0x118] sm:$0x3]
    %v311 = vld [vmem:[#allocation2 + $0x120] sm:$0xff]
    %v312 = vld [vmem:[#allocation2 + $0x128] sm:$0xff]
    %v313 = vld [vmem:[#allocation2 + $0x130] sm:$0x3]
    %v314 = vld [vmem:[#allocation2 + $0x138] sm:$0xff]
    %v315 = vld [vmem:[#allocation2 + $0x140] sm:$0xff]
    %v316 = vld [vmem:[#allocation2 + $0x148] sm:$0x3]
    %v317 = vld [vmem:[#allocation2 + $0x150] sm:$0xff]
    %v318 = vld [vmem:[#allocation2 + $0x158] sm:$0xff]
    %v319 = vld [vmem:[#allocation2 + $0x160] sm:$0x3]
    %v320 = vld [vmem:[#allocation2 + $0x168] sm:$0xff]
    %v321 = vld [vmem:[#allocation2 + $0x170] sm:$0xff]
    %v322 = vld [vmem:[#allocation2 + $0x178] sm:$0x3]
    %v323 = vld [vmem:[#allocation2 + $0x180] sm:$0xff]
    %v324 = vld [vmem:[#allocation2 + $0x188] sm:$0xff]
    %v325 = vld [vmem:[#allocation2 + $0x190] sm:$0x3]
    %v326 = vld [vmem:[#allocation2 + $0x198] sm:$0xff]
    %v327 = vld [vmem:[#allocation2 + $0x1a0] sm:$0xff]
    %v328 = vld [vmem:[#allocation2 + $0x1a8] sm:$0x3]
    %v329 = vld [vmem:[#allocation2 + $0x1b0] sm:$0xff]
    %v330 = vld [vmem:[#allocation2 + $0x1b8] sm:$0xff]
    %v331 = vld [vmem:[#allocation2 + $0x1c0] sm:$0x3]
    %v332 = vld [vmem:[#allocation2 + $0x1c8] sm:$0xff]
    %v333 = vld [vmem:[#allocation2 + $0x1d0] sm:$0xff]
    %v334 = vld [vmem:[#allocation2 + $0x1d8] sm:$0x3]
    %v335 = vld [vmem:[#allocation2 + $0x1e0] sm:$0xff]
    %v336 = vld [vmem:[#allocation2 + $0x1e8] sm:$0xff]
    %v337 = vld [vmem:[#allocation2 + $0x1f0] sm:$0x3]
    %v338 = vld [vmem:[#allocation2 + $0x1f8] sm:$0xff]
    %v339 = vld [vmem:[#allocation2 + $0x200] sm:$0xff]
    %v340 = vld [vmem:[#allocation2 + $0x208] sm:$0x3]
    %v341 = vld [vmem:[#allocation2 + $0x210] sm:$0xff]
    %v342 = vld [vmem:[#allocation2 + $0x218] sm:$0xff]
    %v343 = vld [vmem:[#allocation2 + $0x220] sm:$0x3]
    %v344 = vld [vmem:[#allocation2 + $0x228] sm:$0xff]
    %v345 = vld [vmem:[#allocation2 + $0x230] sm:$0xff]
    %v346 = vld [vmem:[#allocation2 + $0x238] sm:$0x3]
    %v347 = vld [vmem:[#allocation2 + $0x240] sm:$0xff]
    %v348 = vld [vmem:[#allocation2 + $0x248] sm:$0xff]
    %v349 = vld [vmem:[#allocation2 + $0x250] sm:$0x3]
    %v350 = vld [vmem:[#allocation2 + $0x258] sm:$0xff]
    %v351 = vld [vmem:[#allocation2 + $0x260] sm:$0xff]
    %v352 = vld [vmem:[#allocation2 + $0x268] sm:$0x3]
    %v353 = vld [vmem:[#allocation2 + $0x270] sm:$0xff]
    %v354 = vld [vmem:[#allocation2 + $0x278] sm:$0xff]
    %v355 = vld [vmem:[#allocation2 + $0x280] sm:$0x3]
    %v356 = vld [vmem:[#allocation2 + $0x288] sm:$0xff]
    %v357 = vld [vmem:[#allocation2 + $0x290] sm:$0xff]
    %v358 = vld [vmem:[#allocation2 + $0x298] sm:$0x3]
    %v359 = vld [vmem:[#allocation2 + $0x2a0] sm:$0xff]
    %v360 = vld [vmem:[#allocation2 + $0x2a8] sm:$0xff]
    %v361 = vld [vmem:[#allocation2 + $0x2b0] sm:$0x3]
    %v362 = vld [vmem:[#allocation2 + $0x2b8] sm:$0xff]
    %v363 = vld [vmem:[#allocation2 + $0x2c0] sm:$0xff]
    %v364 = vld [vmem:[#allocation2 + $0x2c8] sm:$0x3]
    %v365 = vld [vmem:[#allocation2 + $0x2d0] sm:$0xff]
    %v366 = vld [vmem:[#allocation2 + $0x2d8] sm:$0xff]
    %v367 = vld [vmem:[#allocation2 + $0x2e0] sm:$0x3]
    %v368 = vld [vmem:[#allocation2 + $0x2e8] sm:$0xff]
    %v369 = vld [vmem:[#allocation2 + $0x2f0] sm:$0xff]
    %v370 = vld [vmem:[#allocation2 + $0x2f8] sm:$0x3]
    %v371 = vld [vmem:[#allocation2 + $0x300] sm:$0xff]
    %v372 = vld [vmem:[#allocation2 + $0x308] sm:$0xff]
    %v373 = vld [vmem:[#allocation2 + $0x310] sm:$0x3]
    %v374 = vld [vmem:[#allocation2 + $0x318] sm:$0xff]
    %v375 = vld [vmem:[#allocation2 + $0x320] sm:$0xff]
    %v376 = vld [vmem:[#allocation2 + $0x328] sm:$0x3]
    %v377 = vld [vmem:[#allocation2 + $0x330] sm:$0xff]
    %v378 = vld [vmem:[#allocation2 + $0x338] sm:$0xff]
    %v379 = vld [vmem:[#allocation2 + $0x340] sm:$0x3]
    %v380 = vld [vmem:[#allocation2 + $0x348] sm:$0xff]
    %v381 = vld [vmem:[#allocation2 + $0x350] sm:$0xff]
    %v382 = vld [vmem:[#allocation2 + $0x358] sm:$0x3]
    %v383 = vadd.f32 %v275, %v278
    %v384 = vadd.f32 %v276, %v279
    %v385 = vadd.f32 %v277, %v280
    %v386 = vadd.f32 %v278, %v281
    %v387 = vadd.f32 %v279, %v282
    %v388 = vadd.f32 %v280, %v283
    %v389 = vadd.f32 %v281, %v284
    %v390 = vadd.f32 %v282, %v285
    %v391 = vadd.f32 %v283, %v286
    %v392 = vadd.f32 %v284, %v287
    %v393 = vadd.f32 %v285, %v288
    %v394 = vadd.f32 %v286, %v289
    %v395 = vadd.f32 %v287, %v290
    %v396 = vadd.f32 %v288, %v291
    %v397 = vadd.f32 %v289, %v292
    %v398 = vadd.f32 %v290, %v293
    %v399 = vadd.f32 %v291, %v294
    %v400 = vadd.f32 %v292, %v295
    %v401 = vadd.f32 %v293, %v296
    %v402 = vadd.f32 %v294, %v297
    %v403 = vadd.f32 %v295, %v298
    %v404 = vadd.f32 %v296, %v299
    %v405 = vadd.f32 %v297, %v300
    %v406 = vadd.f32 %v298, %v301
    %v407 = vadd.f32 %v299, %v302
    %v408 = vadd.f32 %v300, %v303
    %v409 = vadd.f32 %v301, %v304
    %v410 = vadd.f32 %v302, %v305
    %v411 = vadd.f32 %v303, %v306
    %v412 = vadd.f32 %v304, %v307
    %v413 = vadd.f32 %v305, %v308
    %v414 = vadd.f32 %v306, %v309
    %v415 = vadd.f32 %v307, %v310
    %v416 = vadd.f32 %v308, %v311
    %v417 = vadd.f32 %v309, %v312
    %v418 = vadd.f32 %v310, %v313
    %v419 = vadd.f32 %v311, %v314
    %v420 = vadd.f32 %v312, %v315
    %v421 = vadd.f32 %v313, %v316
    %v422 = vadd.f32 %v314, %v317
    %v423 = vadd.f32 %v315, %v318
    %v424 = vadd.f32 %v316, %v319
    %v425 = vadd.f32 %v317, %v320
    %v426 = vadd.f32 %v318, %v321
    %v427 = vadd.f32 %v319, %v322
    %v428 = vadd.f32 %v320, %v323
    %v429 = vadd.f32 %v321, %v324
    %v430 = vadd.f32 %v322, %v325
    %v431 = vadd.f32 %v329, %v332
    %v432 = vadd.f32 %v330, %v333
    %v433 = vadd.f32 %v331, %v334
    %v434 = vadd.f32 %v332, %v335
    %v435 = vadd.f32 %v333, %v336
    %v436 = vadd.f32 %v334, %v337
    %v437 = vadd.f32 %v335, %v338
    %v438 = vadd.f32 %v336, %v339
    %v439 = vadd.f32 %v337, %v340
    %v440 = vadd.f32 %v338, %v341
    %v441 = vadd.f32 %v339, %v342
    %v442 = vadd.f32 %v340, %v343
    %v443 = vadd.f32 %v341, %v344
    %v444 = vadd.f32 %v342, %v345
    %v445 = vadd.f32 %v343, %v346
    %v446 = vadd.f32 %v344, %v347
    %v447 = vadd.f32 %v345, %v348
    %v448 = vadd.f32 %v346, %v349
    %v449 = vadd.f32 %v347, %v350
    %v450 = vadd.f32 %v348, %v351
    %v451 = vadd.f32 %v349, %v352
    %v452 = vadd.f32 %v350, %v353
    %v453 = vadd.f32 %v351, %v354
    %v454 = vadd.f32 %v352, %v355
    %v455 = vadd.f32 %v353, %v356
    %v456 = vadd.f32 %v354, %v357
    %v457 = vadd.f32 %v355, %v358
    %v458 = vadd.f32 %v356, %v359
    %v459 = vadd.f32 %v357, %v360
    %v460 = vadd.f32 %v358, %v361
    %v461 = vadd.f32 %v359, %v362
    %v462 = vadd.f32 %v360, %v363
    %v463 = vadd.f32 %v361, %v364
    %v464 = vadd.f32 %v362, %v365
    %v465 = vadd.f32 %v363, %v366
    %v466 = vadd.f32 %v364, %v367
    %v467 = vadd.f32 %v365, %v368
    %v468 = vadd.f32 %v366, %v369
    %v469 = vadd.f32 %v367, %v370
    %v470 = vadd.f32 %v368, %v371
    %v471 = vadd.f32 %v369, %v372
    %v472 = vadd.f32 %v370, %v373
    %v473 = vadd.f32 %v371, %v374
    %v474 = vadd.f32 %v372, %v375
    %v475 = vadd.f32 %v373, %v376
    %v476 = vadd.f32 %v374, %v377
    %v477 = vadd.f32 %v375, %v378
    %v478 = vadd.f32 %v376, %v379
    %v479 = vadd.f32 %v383, %v281
    %v480 = vadd.f32 %v384, %v282
    %v481 = vadd.f32 %v385, %v283
    %v482 = vadd.f32 %v386, %v284
    %v483 = vadd.f32 %v387, %v285
    %v484 = vadd.f32 %v388, %v286
    %v485 = vadd.f32 %v389, %v287
    %v486 = vadd.f32 %v390, %v288
    %v487 = vadd.f32 %v391, %v289
    %v488 = vadd.f32 %v392, %v290
    %v489 = vadd.f32 %v393, %v291
    %v490 = vadd.f32 %v394, %v292
    %v491 = vadd.f32 %v395, %v293
    %v492 = vadd.f32 %v396, %v294
    %v493 = vadd.f32 %v397, %v295
    %v494 = vadd.f32 %v398, %v296
    %v495 = vadd.f32 %v399, %v297
    %v496 = vadd.f32 %v400, %v298
    %v497 = vadd.f32 %v401, %v299
    %v498 = vadd.f32 %v402, %v300
    %v499 = vadd.f32 %v403, %v301
    %v500 = vadd.f32 %v404, %v302
    %v501 = vadd.f32 %v405, %v303
    %v502 = vadd.f32 %v406, %v304
    %v503 = vadd.f32 %v407, %v305
    %v504 = vadd.f32 %v408, %v306
    %v505 = vadd.f32 %v409, %v307
    %v506 = vadd.f32 %v410, %v308
    %v507 = vadd.f32 %v411, %v309
    %v508 = vadd.f32 %v412, %v310
    %v509 = vadd.f32 %v413, %v311
    %v510 = vadd.f32 %v414, %v312
    %v511 = vadd.f32 %v415, %v313
    %v512 = vadd.f32 %v416, %v314
    %v513 = vadd.f32 %v417, %v315
    %v514 = vadd.f32 %v418, %v316
    %v515 = vadd.f32 %v419, %v317
    %v516 = vadd.f32 %v420, %v318
    %v517 = vadd.f32 %v421, %v319
    %v518 = vadd.f32 %v422, %v320
    %v519 = vadd.f32 %v423, %v321
    %v520 = vadd.f32 %v424, %v322
    %v521 = vadd.f32 %v425, %v323
    %v522 = vadd.f32 %v426, %v324
    %v523 = vadd.f32 %v427, %v325
    %v524 = vadd.f32 %v428, %v326
    %v525 = vadd.f32 %v429, %v327
    %v526 = vadd.f32 %v430, %v328
    %v527 = vadd.f32 %v431, %v335
    %v528 = vadd.f32 %v432, %v336
    %v529 = vadd.f32 %v433, %v337
    %v530 = vadd.f32 %v434, %v338
    %v531 = vadd.f32 %v435, %v339
    %v532 = vadd.f32 %v436, %v340
    %v533 = vadd.f32 %v437, %v341
    %v534 = vadd.f32 %v438, %v342
    %v535 = vadd.f32 %v439, %v343
    %v536 = vadd.f32 %v440, %v344
    %v537 = vadd.f32 %v441, %v345
    %v538 = vadd.f32 %v442, %v346
    %v539 = vadd.f32 %v443, %v347
    %v540 = vadd.f32 %v444, %v348
    %v541 = vadd.f32 %v445, %v349
    %v542 = vadd.f32 %v446, %v350
    %v543 = vadd.f32 %v447, %v351
    %v544 = vadd.f32 %v448, %v352
    %v545 = vadd.f32 %v449, %v353
    %v546 = vadd.f32 %v450, %v354
    %v547 = vadd.f32 %v451, %v355
    %v548 = vadd.f32 %v452, %v356
    %v549 = vadd.f32 %v453, %v357
    %v550 = vadd.f32 %v454, %v358
    %v551 = vadd.f32 %v455, %v359
    %v552 = vadd.f32 %v456, %v360
    %v553 = vadd.f32 %v457, %v361
    %v554 = vadd.f32 %v458, %v362
    %v555 = vadd.f32 %v459, %v363
    %v556 = vadd.f32 %v460, %v364
    %v557 = vadd.f32 %v461, %v365
    %v558 = vadd.f32 %v462, %v366
    %v559 = vadd.f32 %v463, %v367
    %v560 = vadd.f32 %v464, %v368
    %v561 = vadd.f32 %v465, %v369
    %v562 = vadd.f32 %v466, %v370
    %v563 = vadd.f32 %v467, %v371
    %v564 = vadd.f32 %v468, %v372
    %v565 = vadd.f32 %v469, %v373
    %v566 = vadd.f32 %v470, %v374
    %v567 = vadd.f32 %v471, %v375
    %v568 = vadd.f32 %v472, %v376
    %v569 = vadd.f32 %v473, %v377
    %v570 = vadd.f32 %v474, %v378
    %v571 = vadd.f32 %v475, %v379
    %v572 = vadd.f32 %v476, %v380
    %v573 = vadd.f32 %v477, %v381
    %v574 = vadd.f32 %v478, %v382
    %vm671 = vcmask 1046528
    %v672 = vrot.slane %v479, 1
    %v673 = vrot.slane %v480, 1
    %v674 = vsel %vm671, %v672, %v673
    %v675 = vrot.slane %v481, 1
    %v676 = vsel %vm671, %v673, %v675
    %v677 = vrot.slane %v482, 1
    %v678 = vrot.slane %v483, 1
    %v679 = vsel %vm671, %v677, %v678
    %v680 = vrot.slane %v484, 1
    %v681 = vsel %vm671, %v678, %v680
    %v682 = vrot.slane %v485, 1
    %v683 = vrot.slane %v486, 1
    %v684 = vsel %vm671, %v682, %v683
    %v685 = vrot.slane %v487, 1
    %v686 = vsel %vm671, %v683, %v685
    %v687 = vrot.slane %v488, 1
    %v688 = vrot.slane %v489, 1
    %v689 = vsel %vm671, %v687, %v688
    %v690 = vrot.slane %v490, 1
    %v691 = vsel %vm671, %v688, %v690
    %v692 = vrot.slane %v491, 1
    %v693 = vrot.slane %v492, 1
    %v694 = vsel %vm671, %v692, %v693
    %v695 = vrot.slane %v493, 1
    %v696 = vsel %vm671, %v693, %v695
    %v697 = vrot.slane %v494, 1
    %v698 = vrot.slane %v495, 1
    %v699 = vsel %vm671, %v697, %v698
    %v700 = vrot.slane %v496, 1
    %v701 = vsel %vm671, %v698, %v700
    %v702 = vrot.slane %v497, 1
    %v703 = vrot.slane %v498, 1
    %v704 = vsel %vm671, %v702, %v703
    %v705 = vrot.slane %v499, 1
    %v706 = vsel %vm671, %v703, %v705
    %v707 = vrot.slane %v500, 1
    %v708 = vrot.slane %v501, 1
    %v709 = vsel %vm671, %v707, %v708
    %v710 = vrot.slane %v502, 1
    %v711 = vsel %vm671, %v708, %v710
    %v712 = vrot.slane %v503, 1
    %v713 = vrot.slane %v504, 1
    %v714 = vsel %vm671, %v712, %v713
    %v715 = vrot.slane %v505, 1
    %v716 = vsel %vm671, %v713, %v715
    %v717 = vrot.slane %v506, 1
    %v718 = vrot.slane %v507, 1
    %v719 = vsel %vm671, %v717, %v718
    %v720 = vrot.slane %v508, 1
    %v721 = vsel %vm671, %v718, %v720
    %v722 = vrot.slane %v509, 1
    %v723 = vrot.slane %v510, 1
    %v724 = vsel %vm671, %v722, %v723
    %v725 = vrot.slane %v511, 1
    %v726 = vsel %vm671, %v723, %v725
    %v727 = vrot.slane %v512, 1
    %v728 = vrot.slane %v513, 1
    %v729 = vsel %vm671, %v727, %v728
    %v730 = vrot.slane %v514, 1
    %v731 = vsel %vm671, %v728, %v730
    %v732 = vrot.slane %v515, 1
    %v733 = vrot.slane %v516, 1
    %v734 = vsel %vm671, %v732, %v733
    %v735 = vrot.slane %v517, 1
    %v736 = vsel %vm671, %v733, %v735
    %v737 = vrot.slane %v518, 1
    %v738 = vrot.slane %v519, 1
    %v739 = vsel %vm671, %v737, %v738
    %v740 = vrot.slane %v520, 1
    %v741 = vsel %vm671, %v738, %v740
    %v742 = vrot.slane %v521, 1
    %v743 = vrot.slane %v522, 1
    %v744 = vsel %vm671, %v742, %v743
    %v745 = vrot.slane %v523, 1
    %v746 = vsel %vm671, %v743, %v745
    %v747 = vrot.slane %v524, 1
    %v748 = vrot.slane %v525, 1
    %v749 = vsel %vm671, %v747, %v748
    %v750 = vrot.slane %v526, 1
    %v751 = vsel %vm671, %v748, %v750
    %v752 = vrot.slane %v527, 1
    %v753 = vrot.slane %v528, 1
    %v754 = vsel %vm671, %v752, %v753
    %v755 = vrot.slane %v529, 1
    %v756 = vsel %vm671, %v753, %v755
    %v757 = vrot.slane %v530, 1
    %v758 = vrot.slane %v531, 1
    %v759 = vsel %vm671, %v757, %v758
    %v760 = vrot.slane %v532, 1
    %v761 = vsel %vm671, %v758, %v760
    %v762 = vrot.slane %v533, 1
    %v763 = vrot.slane %v534, 1
    %v764 = vsel %vm671, %v762, %v763
    %v765 = vrot.slane %v535, 1
    %v766 = vsel %vm671, %v763, %v765
    %v767 = vrot.slane %v536, 1
    %v768 = vrot.slane %v537, 1
    %v769 = vsel %vm671, %v767, %v768
    %v770 = vrot.slane %v538, 1
    %v771 = vsel %vm671, %v768, %v770
    %v772 = vrot.slane %v539, 1
    %v773 = vrot.slane %v540, 1
    %v774 = vsel %vm671, %v772, %v773
    %v775 = vrot.slane %v541, 1
    %v776 = vsel %vm671, %v773, %v775
    %v777 = vrot.slane %v542, 1
    %v778 = vrot.slane %v543, 1
    %v779 = vsel %vm671, %v777, %v778
    %v780 = vrot.slane %v544, 1
    %v781 = vsel %vm671, %v778, %v780
    %v782 = vrot.slane %v545, 1
    %v783 = vrot.slane %v546, 1
    %v784 = vsel %vm671, %v782, %v783
    %v785 = vrot.slane %v547, 1
    %v786 = vsel %vm671, %v783, %v785
    %v787 = vrot.slane %v548, 1
    %v788 = vrot.slane %v549, 1
    %v789 = vsel %vm671, %v787, %v788
    %v790 = vrot.slane %v550, 1
    %v791 = vsel %vm671, %v788, %v790
    %v792 = vrot.slane %v551, 1
    %v793 = vrot.slane %v552, 1
    %v794 = vsel %vm671, %v792, %v793
    %v795 = vrot.slane %v553, 1
    %v796 = vsel %vm671, %v793, %v795
    %v797 = vrot.slane %v554, 1
    %v798 = vrot.slane %v555, 1
    %v799 = vsel %vm671, %v797, %v798
    %v800 = vrot.slane %v556, 1
    %v801 = vsel %vm671, %v798, %v800
    %v802 = vrot.slane %v557, 1
    %v803 = vrot.slane %v558, 1
    %v804 = vsel %vm671, %v802, %v803
    %v805 = vrot.slane %v559, 1
    %v806 = vsel %vm671, %v803, %v805
    %v807 = vrot.slane %v560, 1
    %v808 = vrot.slane %v561, 1
    %v809 = vsel %vm671, %v807, %v808
    %v810 = vrot.slane %v562, 1
    %v811 = vsel %vm671, %v808, %v810
    %v812 = vrot.slane %v563, 1
    %v813 = vrot.slane %v564, 1
    %v814 = vsel %vm671, %v812, %v813
    %v815 = vrot.slane %v565, 1
    %v816 = vsel %vm671, %v813, %v815
    %v817 = vrot.slane %v566, 1
    %v818 = vrot.slane %v567, 1
    %v819 = vsel %vm671, %v817, %v818
    %v820 = vrot.slane %v568, 1
    %v821 = vsel %vm671, %v818, %v820
    %v822 = vrot.slane %v569, 1
    %v823 = vrot.slane %v570, 1
    %v824 = vsel %vm671, %v822, %v823
    %v825 = vrot.slane %v571, 1
    %v826 = vsel %vm671, %v823, %v825
    %v827 = vrot.slane %v572, 1
    %v828 = vrot.slane %v573, 1
    %v829 = vsel %vm671, %v827, %v828
    %v830 = vrot.slane %v574, 1
    %v831 = vsel %vm671, %v828, %v830
    %v896 = vadd.f32 %v479, %v674
    %v897 = vadd.f32 %v480, %v676
    %v898 = vadd.f32 %v482, %v679
    %v899 = vadd.f32 %v483, %v681
    %v900 = vadd.f32 %v485, %v684
    %v901 = vadd.f32 %v486, %v686
    %v902 = vadd.f32 %v488, %v689
    %v903 = vadd.f32 %v489, %v691
    %v904 = vadd.f32 %v491, %v694
    %v905 = vadd.f32 %v492, %v696
    %v906 = vadd.f32 %v494, %v699
    %v907 = vadd.f32 %v495, %v701
    %v908 = vadd.f32 %v497, %v704
    %v909 = vadd.f32 %v498, %v706
    %v910 = vadd.f32 %v500, %v709
    %v911 = vadd.f32 %v501, %v711
    %v912 = vadd.f32 %v503, %v714
    %v913 = vadd.f32 %v504, %v716
    %v914 = vadd.f32 %v506, %v719
    %v915 = vadd.f32 %v507, %v721
    %v916 = vadd.f32 %v509, %v724
    %v917 = vadd.f32 %v510, %v726
    %v918 = vadd.f32 %v512, %v729
    %v919 = vadd.f32 %v513, %v731
    %v920 = vadd.f32 %v515, %v734
    %v921 = vadd.f32 %v516, %v736
    %v922 = vadd.f32 %v518, %v739
    %v923 = vadd.f32 %v519, %v741
    %v924 = vadd.f32 %v521, %v744
    %v925 = vadd.f32 %v522, %v746
    %v926 = vadd.f32 %v524, %v749
    %v927 = vadd.f32 %v525, %v751
    %v928 = vadd.f32 %v527, %v754
    %v929 = vadd.f32 %v528, %v756
    %v930 = vadd.f32 %v530, %v759
    %v931 = vadd.f32 %v531, %v761
    %v932 = vadd.f32 %v533, %v764
    %v933 = vadd.f32 %v534, %v766
    %v934 = vadd.f32 %v536, %v769
    %v935 = vadd.f32 %v537, %v771
    %v936 = vadd.f32 %v539, %v774
    %v937 = vadd.f32 %v540, %v776
    %v938 = vadd.f32 %v542, %v779
    %v939 = vadd.f32 %v543, %v781
    %v940 = vadd.f32 %v545, %v784
    %v941 = vadd.f32 %v546, %v786
    %v942 = vadd.f32 %v548, %v789
    %v943 = vadd.f32 %v549, %v791
    %v944 = vadd.f32 %v551, %v794
    %v945 = vadd.f32 %v552, %v796
    %v946 = vadd.f32 %v554, %v799
    %v947 = vadd.f32 %v555, %v801
    %v948 = vadd.f32 %v557, %v804
    %v949 = vadd.f32 %v558, %v806
    %v950 = vadd.f32 %v560, %v809
    %v951 = vadd.f32 %v561, %v811
    %v952 = vadd.f32 %v563, %v814
    %v953 = vadd.f32 %v564, %v816
    %v954 = vadd.f32 %v566, %v819
    %v955 = vadd.f32 %v567, %v821
    %v956 = vadd.f32 %v569, %v824
    %v957 = vadd.f32 %v570, %v826
    %v958 = vadd.f32 %v572, %v829
    %v959 = vadd.f32 %v573, %v831
    %vm960 = vcmask 1045504
    %v961 = vrot.slane %v479, 2
    %v962 = vrot.slane %v480, 2
    %v963 = vsel %vm960, %v961, %v962
    %v964 = vrot.slane %v481, 2
    %v965 = vsel %vm960, %v962, %v964
    %v966 = vrot.slane %v482, 2
    %v967 = vrot.slane %v483, 2
    %v968 = vsel %vm960, %v966, %v967
    %v969 = vrot.slane %v484, 2
    %v970 = vsel %vm960, %v967, %v969
    %v971 = vrot.slane %v485, 2
    %v972 = vrot.slane %v486, 2
    %v973 = vsel %vm960, %v971, %v972
    %v974 = vrot.slane %v487, 2
    %v975 = vsel %vm960, %v972, %v974
    %v976 = vrot.slane %v488, 2
    %v977 = vrot.slane %v489, 2
    %v978 = vsel %vm960, %v976, %v977
    %v979 = vrot.slane %v490, 2
    %v980 = vsel %vm960, %v977, %v979
    %v981 = vrot.slane %v491, 2
    %v982 = vrot.slane %v492, 2
    %v983 = vsel %vm960, %v981, %v982
    %v984 = vrot.slane %v493, 2
    %v985 = vsel %vm960, %v982, %v984
    %v986 = vrot.slane %v494, 2
    %v987 = vrot.slane %v495, 2
    %v988 = vsel %vm960, %v986, %v987
    %v989 = vrot.slane %v496, 2
    %v990 = vsel %vm960, %v987, %v989
    %v991 = vrot.slane %v497, 2
    %v992 = vrot.slane %v498, 2
    %v993 = vsel %vm960, %v991, %v992
    %v994 = vrot.slane %v499, 2
    %v995 = vsel %vm960, %v992, %v994
    %v996 = vrot.slane %v500, 2
    %v997 = vrot.slane %v501, 2
    %v998 = vsel %vm960, %v996, %v997
    %v999 = vrot.slane %v502, 2
    %v1000 = vsel %vm960, %v997, %v999
    %v1001 = vrot.slane %v503, 2
    %v1002 = vrot.slane %v504, 2
    %v1003 = vsel %vm960, %v1001, %v1002
    %v1004 = vrot.slane %v505, 2
    %v1005 = vsel %vm960, %v1002, %v1004
    %v1006 = vrot.slane %v506, 2
    %v1007 = vrot.slane %v507, 2
    %v1008 = vsel %vm960, %v1006, %v1007
    %v1009 = vrot.slane %v508, 2
    %v1010 = vsel %vm960, %v1007, %v1009
    %v1011 = vrot.slane %v509, 2
    %v1012 = vrot.slane %v510, 2
    %v1013 = vsel %vm960, %v1011, %v1012
    %v1014 = vrot.slane %v511, 2
    %v1015 = vsel %vm960, %v1012, %v1014
    %v1016 = vrot.slane %v512, 2
    %v1017 = vrot.slane %v513, 2
    %v1018 = vsel %vm960, %v1016, %v1017
    %v1019 = vrot.slane %v514, 2
    %v1020 = vsel %vm960, %v1017, %v1019
    %v1021 = vrot.slane %v515, 2
    %v1022 = vrot.slane %v516, 2
    %v1023 = vsel %vm960, %v1021, %v1022
    %v1024 = vrot.slane %v517, 2
    %v1025 = vsel %vm960, %v1022, %v1024
    %v1026 = vrot.slane %v518, 2
    %v1027 = vrot.slane %v519, 2
    %v1028 = vsel %vm960, %v1026, %v1027
    %v1029 = vrot.slane %v520, 2
    %v1030 = vsel %vm960, %v1027, %v1029
    %v1031 = vrot.slane %v521, 2
    %v1032 = vrot.slane %v522, 2
    %v1033 = vsel %vm960, %v1031, %v1032
    %v1034 = vrot.slane %v523, 2
    %v1035 = vsel %vm960, %v1032, %v1034
    %v1036 = vrot.slane %v524, 2
    %v1037 = vrot.slane %v525, 2
    %v1038 = vsel %vm960, %v1036, %v1037
    %v1039 = vrot.slane %v526, 2
    %v1040 = vsel %vm960, %v1037, %v1039
    %v1041 = vrot.slane %v527, 2
    %v1042 = vrot.slane %v528, 2
    %v1043 = vsel %vm960, %v1041, %v1042
    %v1044 = vrot.slane %v529, 2
    %v1045 = vsel %vm960, %v1042, %v1044
    %v1046 = vrot.slane %v530, 2
    %v1047 = vrot.slane %v531, 2
    %v1048 = vsel %vm960, %v1046, %v1047
    %v1049 = vrot.slane %v532, 2
    %v1050 = vsel %vm960, %v1047, %v1049
    %v1051 = vrot.slane %v533, 2
    %v1052 = vrot.slane %v534, 2
    %v1053 = vsel %vm960, %v1051, %v1052
    %v1054 = vrot.slane %v535, 2
    %v1055 = vsel %vm960, %v1052, %v1054
    %v1056 = vrot.slane %v536, 2
    %v1057 = vrot.slane %v537, 2
    %v1058 = vsel %vm960, %v1056, %v1057
    %v1059 = vrot.slane %v538, 2
    %v1060 = vsel %vm960, %v1057, %v1059
    %v1061 = vrot.slane %v539, 2
    %v1062 = vrot.slane %v540, 2
    %v1063 = vsel %vm960, %v1061, %v1062
    %v1064 = vrot.slane %v541, 2
    %v1065 = vsel %vm960, %v1062, %v1064
    %v1066 = vrot.slane %v542, 2
    %v1067 = vrot.slane %v543, 2
    %v1068 = vsel %vm960, %v1066, %v1067
    %v1069 = vrot.slane %v544, 2
    %v1070 = vsel %vm960, %v1067, %v1069
    %v1071 = vrot.slane %v545, 2
    %v1072 = vrot.slane %v546, 2
    %v1073 = vsel %vm960, %v1071, %v1072
    %v1074 = vrot.slane %v547, 2
    %v1075 = vsel %vm960, %v1072, %v1074
    %v1076 = vrot.slane %v548, 2
    %v1077 = vrot.slane %v549, 2
    %v1078 = vsel %vm960, %v1076, %v1077
    %v1079 = vrot.slane %v550, 2
    %v1080 = vsel %vm960, %v1077, %v1079
    %v1081 = vrot.slane %v551, 2
    %v1082 = vrot.slane %v552, 2
    %v1083 = vsel %vm960, %v1081, %v1082
    %v1084 = vrot.slane %v553, 2
    %v1085 = vsel %vm960, %v1082, %v1084
    %v1086 = vrot.slane %v554, 2
    %v1087 = vrot.slane %v555, 2
    %v1088 = vsel %vm960, %v1086, %v1087
    %v1089 = vrot.slane %v556, 2
    %v1090 = vsel %vm960, %v1087, %v1089
    %v1091 = vrot.slane %v557, 2
    %v1092 = vrot.slane %v558, 2
    %v1093 = vsel %vm960, %v1091, %v1092
    %v1094 = vrot.slane %v559, 2
    %v1095 = vsel %vm960, %v1092, %v1094
    %v1096 = vrot.slane %v560, 2
    %v1097 = vrot.slane %v561, 2
    %v1098 = vsel %vm960, %v1096, %v1097
    %v1099 = vrot.slane %v562, 2
    %v1100 = vsel %vm960, %v1097, %v1099
    %v1101 = vrot.slane %v563, 2
    %v1102 = vrot.slane %v564, 2
    %v1103 = vsel %vm960, %v1101, %v1102
    %v1104 = vrot.slane %v565, 2
    %v1105 = vsel %vm960, %v1102, %v1104
    %v1106 = vrot.slane %v566, 2
    %v1107 = vrot.slane %v567, 2
    %v1108 = vsel %vm960, %v1106, %v1107
    %v1109 = vrot.slane %v568, 2
    %v1110 = vsel %vm960, %v1107, %v1109
    %v1111 = vrot.slane %v569, 2
    %v1112 = vrot.slane %v570, 2
    %v1113 = vsel %vm960, %v1111, %v1112
    %v1114 = vrot.slane %v571, 2
    %v1115 = vsel %vm960, %v1112, %v1114
    %v1116 = vrot.slane %v572, 2
    %v1117 = vrot.slane %v573, 2
    %v1118 = vsel %vm960, %v1116, %v1117
    %v1119 = vrot.slane %v574, 2
    %v1120 = vsel %vm960, %v1117, %v1119
    %v1185 = vadd.f32 %v896, %v963
    %v1186 = vadd.f32 %v897, %v965
    %v1187 = vadd.f32 %v898, %v968
    %v1188 = vadd.f32 %v899, %v970
    %v1189 = vadd.f32 %v900, %v973
    %v1190 = vadd.f32 %v901, %v975
    %v1191 = vadd.f32 %v902, %v978
    %v1192 = vadd.f32 %v903, %v980
    %v1193 = vadd.f32 %v904, %v983
    %v1194 = vadd.f32 %v905, %v985
    %v1195 = vadd.f32 %v906, %v988
    %v1196 = vadd.f32 %v907, %v990
    %v1197 = vadd.f32 %v908, %v993
    %v1198 = vadd.f32 %v909, %v995
    %v1199 = vadd.f32 %v910, %v998
    %v1200 = vadd.f32 %v911, %v1000
    %v1201 = vadd.f32 %v912, %v1003
    %v1202 = vadd.f32 %v913, %v1005
    %v1203 = vadd.f32 %v914, %v1008
    %v1204 = vadd.f32 %v915, %v1010
    %v1205 = vadd.f32 %v916, %v1013
    %v1206 = vadd.f32 %v917, %v1015
    %v1207 = vadd.f32 %v918, %v1018
    %v1208 = vadd.f32 %v919, %v1020
    %v1209 = vadd.f32 %v920, %v1023
    %v1210 = vadd.f32 %v921, %v1025
    %v1211 = vadd.f32 %v922, %v1028
    %v1212 = vadd.f32 %v923, %v1030
    %v1213 = vadd.f32 %v924, %v1033
    %v1214 = vadd.f32 %v925, %v1035
    %v1215 = vadd.f32 %v926, %v1038
    %v1216 = vadd.f32 %v927, %v1040
    %v1217 = vadd.f32 %v928, %v1043
    %v1218 = vadd.f32 %v929, %v1045
    %v1219 = vadd.f32 %v930, %v1048
    %v1220 = vadd.f32 %v931, %v1050
    %v1221 = vadd.f32 %v932, %v1053
    %v1222 = vadd.f32 %v933, %v1055
    %v1223 = vadd.f32 %v934, %v1058
    %v1224 = vadd.f32 %v935, %v1060
    %v1225 = vadd.f32 %v936, %v1063
    %v1226 = vadd.f32 %v937, %v1065
    %v1227 = vadd.f32 %v938, %v1068
    %v1228 = vadd.f32 %v939, %v1070
    %v1229 = vadd.f32 %v940, %v1073
    %v1230 = vadd.f32 %v941, %v1075
    %v1231 = vadd.f32 %v942, %v1078
    %v1232 = vadd.f32 %v943, %v1080
    %v1233 = vadd.f32 %v944, %v1083
    %v1234 = vadd.f32 %v945, %v1085
    %v1235 = vadd.f32 %v946, %v1088
    %v1236 = vadd.f32 %v947, %v1090
    %v1237 = vadd.f32 %v948, %v1093
    %v1238 = vadd.f32 %v949, %v1095
    %v1239 = vadd.f32 %v950, %v1098
    %v1240 = vadd.f32 %v951, %v1100
    %v1241 = vadd.f32 %v952, %v1103
    %v1242 = vadd.f32 %v953, %v1105
    %v1243 = vadd.f32 %v954, %v1108
    %v1244 = vadd.f32 %v955, %v1110
    %v1245 = vadd.f32 %v956, %v1113
    %v1246 = vadd.f32 %v957, %v1115
    %v1247 = vadd.f32 %v958, %v1118
    %v1248 = vadd.f32 %v959, %v1120
    %v1249 = vld [vmem:[%s1] sm:$0xff]
    %v1250 = vld [vmem:[%s1 + $0x8] sm:$0xff]
    %v1251 = vld [vmem:[%s1 + $0x10] sm:$0xff]
    %v1252 = vld [vmem:[%s1 + $0x18] sm:$0xff]
    %v1253 = vld [vmem:[%s1 + $0x20] sm:$0xff]
    %v1254 = vld [vmem:[%s1 + $0x28] sm:$0xff]
    %v1255 = vld [vmem:[%s1 + $0x30] sm:$0xff]
    %v1256 = vld [vmem:[%s1 + $0x38] sm:$0xff]
    %v1257 = vld [vmem:[%s1 + $0x40] sm:$0xff]
    %v1258 = vld [vmem:[%s1 + $0x48] sm:$0xff]
    %v1259 = vld [vmem:[%s1 + $0x50] sm:$0xff]
    %v1260 = vld [vmem:[%s1 + $0x58] sm:$0xff]
    %v1261 = vld [vmem:[%s1 + $0x60] sm:$0xff]
    %v1262 = vld [vmem:[%s1 + $0x68] sm:$0xff]
    %v1263 = vld [vmem:[%s1 + $0x70] sm:$0xff]
    %v1264 = vld [vmem:[%s1 + $0x78] sm:$0xff]
    %v1265 = vld [vmem:[%s1 + $0x80] sm:$0xff]
    %v1266 = vld [vmem:[%s1 + $0x88] sm:$0xff]
    %v1267 = vld [vmem:[%s1 + $0x90] sm:$0xff]
    %v1268 = vld [vmem:[%s1 + $0x98] sm:$0xff]
    %v1269 = vld [vmem:[%s1 + $0xa0] sm:$0xff]
    %v1270 = vld [vmem:[%s1 + $0xa8] sm:$0xff]
    %v1271 = vld [vmem:[%s1 + $0xb0] sm:$0xff]
    %v1272 = vld [vmem:[%s1 + $0xb8] sm:$0xff]
    %v1273 = vld [vmem:[%s1 + $0xc0] sm:$0xff]
    %v1274 = vld [vmem:[%s1 + $0xc8] sm:$0xff]
    %v1275 = vld [vmem:[%s1 + $0xd0] sm:$0xff]
    %v1276 = vld [vmem:[%s1 + $0xd8] sm:$0xff]
    %v1277 = vld [vmem:[%s1 + $0xe0] sm:$0xff]
    %v1278 = vld [vmem:[%s1 + $0xe8] sm:$0xff]
    %v1279 = vld [vmem:[%s1 + $0xf0] sm:$0xff]
    %v1280 = vld [vmem:[%s1 + $0xf8] sm:$0xff]
    %1282 = vset.pattern.permute.xlu0 0
    %1283 = vperm.xlu0 %1282, %v1249
    %v1284 = vpop.permute.xlu0 %1283
    %1287 = vset.pattern.permute.xlu0 0
    %1288 = vperm.xlu0 %1287, %v1250
    %v1289 = vpop.permute.xlu0 %1288
    %1292 = vset.pattern.permute.xlu0 0
    %1293 = vperm.xlu0 %1292, %v1251
    %v1294 = vpop.permute.xlu0 %1293
    %1297 = vset.pattern.permute.xlu0 0
    %1298 = vperm.xlu0 %1297, %v1252
    %v1299 = vpop.permute.xlu0 %1298
    %1302 = vset.pattern.permute.xlu0 0
    %1303 = vperm.xlu0 %1302, %v1253
    %v1304 = vpop.permute.xlu0 %1303
    %1307 = vset.pattern.permute.xlu0 0
    %1308 = vperm.xlu0 %1307, %v1254
    %v1309 = vpop.permute.xlu0 %1308
    %1312 = vset.pattern.permute.xlu0 0
    %1313 = vperm.xlu0 %1312, %v1255
    %v1314 = vpop.permute.xlu0 %1313
    %1317 = vset.pattern.permute.xlu0 0
    %1318 = vperm.xlu0 %1317, %v1256
    %v1319 = vpop.permute.xlu0 %1318
    %1322 = vset.pattern.permute.xlu0 0
    %1323 = vperm.xlu0 %1322, %v1257
    %v1324 = vpop.permute.xlu0 %1323
    %1327 = vset.pattern.permute.xlu0 0
    %1328 = vperm.xlu0 %1327, %v1258
    %v1329 = vpop.permute.xlu0 %1328
    %1332 = vset.pattern.permute.xlu0 0
    %1333 = vperm.xlu0 %1332, %v1259
    %v1334 = vpop.permute.xlu0 %1333
    %1337 = vset.pattern.permute.xlu0 0
    %1338 = vperm.xlu0 %1337, %v1260
    %v1339 = vpop.permute.xlu0 %1338
    %1342 = vset.pattern.permute.xlu0 0
    %1343 = vperm.xlu0 %1342, %v1261
    %v1344 = vpop.permute.xlu0 %1343
    %1347 = vset.pattern.permute.xlu0 0
    %1348 = vperm.xlu0 %1347, %v1262
    %v1349 = vpop.permute.xlu0 %1348
    %1352 = vset.pattern.permute.xlu0 0
    %1353 = vperm.xlu0 %1352, %v1263
    %v1354 = vpop.permute.xlu0 %1353
    %1357 = vset.pattern.permute.xlu0 0
    %1358 = vperm.xlu0 %1357, %v1264
    %v1359 = vpop.permute.xlu0 %1358
    %1362 = vset.pattern.permute.xlu0 0
    %1363 = vperm.xlu0 %1362, %v1265
    %v1364 = vpop.permute.xlu0 %1363
    %1367 = vset.pattern.permute.xlu0 0
    %1368 = vperm.xlu0 %1367, %v1266
    %v1369 = vpop.permute.xlu0 %1368
    %1372 = vset.pattern.permute.xlu0 0
    %1373 = vperm.xlu0 %1372, %v1267
    %v1374 = vpop.permute.xlu0 %1373
    %1377 = vset.pattern.permute.xlu0 0
    %1378 = vperm.xlu0 %1377, %v1268
    %v1379 = vpop.permute.xlu0 %1378
    %1382 = vset.pattern.permute.xlu0 0
    %1383 = vperm.xlu0 %1382, %v1269
    %v1384 = vpop.permute.xlu0 %1383
    %1387 = vset.pattern.permute.xlu0 0
    %1388 = vperm.xlu0 %1387, %v1270
    %v1389 = vpop.permute.xlu0 %1388
    %1392 = vset.pattern.permute.xlu0 0
    %1393 = vperm.xlu0 %1392, %v1271
    %v1394 = vpop.permute.xlu0 %1393
    %1397 = vset.pattern.permute.xlu0 0
    %1398 = vperm.xlu0 %1397, %v1272
    %v1399 = vpop.permute.xlu0 %1398
    %1402 = vset.pattern.permute.xlu0 0
    %1403 = vperm.xlu0 %1402, %v1273
    %v1404 = vpop.permute.xlu0 %1403
    %1407 = vset.pattern.permute.xlu0 0
    %1408 = vperm.xlu0 %1407, %v1274
    %v1409 = vpop.permute.xlu0 %1408
    %1412 = vset.pattern.permute.xlu0 0
    %1413 = vperm.xlu0 %1412, %v1275
    %v1414 = vpop.permute.xlu0 %1413
    %1417 = vset.pattern.permute.xlu0 0
    %1418 = vperm.xlu0 %1417, %v1276
    %v1419 = vpop.permute.xlu0 %1418
    %1422 = vset.pattern.permute.xlu0 0
    %1423 = vperm.xlu0 %1422, %v1277
    %v1424 = vpop.permute.xlu0 %1423
    %1427 = vset.pattern.permute.xlu0 0
    %1428 = vperm.xlu0 %1427, %v1278
    %v1429 = vpop.permute.xlu0 %1428
    %1432 = vset.pattern.permute.xlu0 0
    %1433 = vperm.xlu0 %1432, %v1279
    %v1434 = vpop.permute.xlu0 %1433
    %1437 = vset.pattern.permute.xlu0 0
    %1438 = vperm.xlu0 %1437, %v1280
    %v1439 = vpop.permute.xlu0 %1438
    %v1441 = vmul.f32 %v1185, %v1284
    %v1442 = vmul.f32 %v1186, %v1289
    %v1443 = vmul.f32 %v1187, %v1294
    %v1444 = vmul.f32 %v1188, %v1299
    %v1445 = vmul.f32 %v1189, %v1304
    %v1446 = vmul.f32 %v1190, %v1309
    %v1447 = vmul.f32 %v1191, %v1314
    %v1448 = vmul.f32 %v1192, %v1319
    %v1449 = vmul.f32 %v1193, %v1324
    %v1450 = vmul.f32 %v1194, %v1329
    %v1451 = vmul.f32 %v1195, %v1334
    %v1452 = vmul.f32 %v1196, %v1339
    %v1453 = vmul.f32 %v1197, %v1344
    %v1454 = vmul.f32 %v1198, %v1349
    %v1455 = vmul.f32 %v1199, %v1354
    %v1456 = vmul.f32 %v1200, %v1359
    %v1457 = vmul.f32 %v1201, %v1364
    %v1458 = vmul.f32 %v1202, %v1369
    %v1459 = vmul.f32 %v1203, %v1374
    %v1460 = vmul.f32 %v1204, %v1379
    %v1461 = vmul.f32 %v1205, %v1384
    %v1462 = vmul.f32 %v1206, %v1389
    %v1463 = vmul.f32 %v1207, %v1394
    %v1464 = vmul.f32 %v1208, %v1399
    %v1465 = vmul.f32 %v1209, %v1404
    %v1466 = vmul.f32 %v1210, %v1409
    %v1467 = vmul.f32 %v1211, %v1414
    %v1468 = vmul.f32 %v1212, %v1419
    %v1469 = vmul.f32 %v1213, %v1424
    %v1470 = vmul.f32 %v1214, %v1429
    %v1471 = vmul.f32 %v1215, %v1434
    %v1472 = vmul.f32 %v1216, %v1439
    %v1473 = vmul.f32 %v1217, %v1284
    %v1474 = vmul.f32 %v1218, %v1289
    %v1475 = vmul.f32 %v1219, %v1294
    %v1476 = vmul.f32 %v1220, %v1299
    %v1477 = vmul.f32 %v1221, %v1304
    %v1478 = vmul.f32 %v1222, %v1309
    %v1479 = vmul.f32 %v1223, %v1314
    %v1480 = vmul.f32 %v1224, %v1319
    %v1481 = vmul.f32 %v1225, %v1324
    %v1482 = vmul.f32 %v1226, %v1329
    %v1483 = vmul.f32 %v1227, %v1334
    %v1484 = vmul.f32 %v1228, %v1339
    %v1485 = vmul.f32 %v1229, %v1344
    %v1486 = vmul.f32 %v1230, %v1349
    %v1487 = vmul.f32 %v1231, %v1354
    %v1488 = vmul.f32 %v1232, %v1359
    %v1489 = vmul.f32 %v1233, %v1364
    %v1490 = vmul.f32 %v1234, %v1369
    %v1491 = vmul.f32 %v1235, %v1374
    %v1492 = vmul.f32 %v1236, %v1379
    %v1493 = vmul.f32 %v1237, %v1384
    %v1494 = vmul.f32 %v1238, %v1389
    %v1495 = vmul.f32 %v1239, %v1394
    %v1496 = vmul.f32 %v1240, %v1399
    %v1497 = vmul.f32 %v1241, %v1404
    %v1498 = vmul.f32 %v1242, %v1409
    %v1499 = vmul.f32 %v1243, %v1414
    %v1500 = vmul.f32 %v1244, %v1419
    %v1501 = vmul.f32 %v1245, %v1424
    %v1502 = vmul.f32 %v1246, %v1429
    %v1503 = vmul.f32 %v1247, %v1434
    %v1504 = vmul.f32 %v1248, %v1439
    %v1505 = vadd.f32 %v1441, %v1442
    %v1506 = vadd.f32 %v1505, %v1443
    %v1507 = vadd.f32 %v1506, %v1444
    %v1508 = vadd.f32 %v1507, %v1445
    %v1509 = vadd.f32 %v1508, %v1446
    %v1510 = vadd.f32 %v1509, %v1447
    %v1511 = vadd.f32 %v1510, %v1448
    %v1512 = vadd.f32 %v1511, %v1449
    %v1513 = vadd.f32 %v1512, %v1450
    %v1514 = vadd.f32 %v1513, %v1451
    %v1515 = vadd.f32 %v1514, %v1452
    %v1516 = vadd.f32 %v1515, %v1453
    %v1517 = vadd.f32 %v1516, %v1454
    %v1518 = vadd.f32 %v1517, %v1455
    %v1519 = vadd.f32 %v1518, %v1456
    %v1520 = vadd.f32 %v1519, %v1457
    %v1521 = vadd.f32 %v1520, %v1458
    %v1522 = vadd.f32 %v1521, %v1459
    %v1523 = vadd.f32 %v1522, %v1460
    %v1524 = vadd.f32 %v1523, %v1461
    %v1525 = vadd.f32 %v1524, %v1462
    %v1526 = vadd.f32 %v1525, %v1463
    %v1527 = vadd.f32 %v1526, %v1464
    %v1528 = vadd.f32 %v1527, %v1465
    %v1529 = vadd.f32 %v1528, %v1466
    %v1530 = vadd.f32 %v1529, %v1467
    %v1531 = vadd.f32 %v1530, %v1468
    %v1532 = vadd.f32 %v1531, %v1469
    %v1533 = vadd.f32 %v1532, %v1470
    %v1534 = vadd.f32 %v1533, %v1471
    %v1535 = vadd.f32 %v1534, %v1472
    %v1536 = vadd.f32 %v1535, %v1473
    %v1537 = vadd.f32 %v1536, %v1474
    %v1538 = vadd.f32 %v1537, %v1475
    %v1539 = vadd.f32 %v1538, %v1476
    %v1540 = vadd.f32 %v1539, %v1477
    %v1541 = vadd.f32 %v1540, %v1478
    %v1542 = vadd.f32 %v1541, %v1479
    %v1543 = vadd.f32 %v1542, %v1480
    %v1544 = vadd.f32 %v1543, %v1481
    %v1545 = vadd.f32 %v1544, %v1482
    %v1546 = vadd.f32 %v1545, %v1483
    %v1547 = vadd.f32 %v1546, %v1484
    %v1548 = vadd.f32 %v1547, %v1485
    %v1549 = vadd.f32 %v1548, %v1486
    %v1550 = vadd.f32 %v1549, %v1487
    %v1551 = vadd.f32 %v1550, %v1488
    %v1552 = vadd.f32 %v1551, %v1489
    %v1553 = vadd.f32 %v1552, %v1490
    %v1554 = vadd.f32 %v1553, %v1491
    %v1555 = vadd.f32 %v1554, %v1492
    %v1556 = vadd.f32 %v1555, %v1493
    %v1557 = vadd.f32 %v1556, %v1494
    %v1558 = vadd.f32 %v1557, %v1495
    %v1559 = vadd.f32 %v1558, %v1496
    %v1560 = vadd.f32 %v1559, %v1497
    %v1561 = vadd.f32 %v1560, %v1498
    %v1562 = vadd.f32 %v1561, %v1499
    %v1563 = vadd.f32 %v1562, %v1500
    %v1564 = vadd.f32 %v1563, %v1501
    %v1565 = vadd.f32 %v1564, %v1502
    %v1566 = vadd.f32 %v1565, %v1503
    %v1567 = vadd.f32 %v1566, %v1504
    %v1568 = vrot.slane %v1567, 4
    %v1569 = vadd.f32 %v1567, %v1568
    %v1570 = vrot.slane %v1569, 2
    %v1571 = vadd.f32 %v1569, %v1570
    %v1572 = vrot.slane %v1571, 1
    %v1573 = vadd.f32 %v1571, %v1572
    %v1574 = vmul.f32 %v1441, %v1441
    %v1575 = vmul.f32 %v1442, %v1442
    %v1576 = vmul.f32 %v1443, %v1443
    %v1577 = vmul.f32 %v1444, %v1444
    %v1578 = vmul.f32 %v1445, %v1445
    %v1579 = vmul.f32 %v1446, %v1446
    %v1580 = vmul.f32 %v1447, %v1447
    %v1581 = vmul.f32 %v1448, %v1448
    %v1582 = vmul.f32 %v1449, %v1449
    %v1583 = vmul.f32 %v1450, %v1450
    %v1584 = vmul.f32 %v1451, %v1451
    %v1585 = vmul.f32 %v1452, %v1452
    %v1586 = vmul.f32 %v1453, %v1453
    %v1587 = vmul.f32 %v1454, %v1454
    %v1588 = vmul.f32 %v1455, %v1455
    %v1589 = vmul.f32 %v1456, %v1456
    %v1590 = vmul.f32 %v1457, %v1457
    %v1591 = vmul.f32 %v1458, %v1458
    %v1592 = vmul.f32 %v1459, %v1459
    %v1593 = vmul.f32 %v1460, %v1460
    %v1594 = vmul.f32 %v1461, %v1461
    %v1595 = vmul.f32 %v1462, %v1462
    %v1596 = vmul.f32 %v1463, %v1463
    %v1597 = vmul.f32 %v1464, %v1464
    %v1598 = vmul.f32 %v1465, %v1465
    %v1599 = vmul.f32 %v1466, %v1466
    %v1600 = vmul.f32 %v1467, %v1467
    %v1601 = vmul.f32 %v1468, %v1468
    %v1602 = vmul.f32 %v1469, %v1469
    %v1603 = vmul.f32 %v1470, %v1470
    %v1604 = vmul.f32 %v1471, %v1471
    %v1605 = vmul.f32 %v1472, %v1472
    %v1606 = vmul.f32 %v1473, %v1473
    %v1607 = vmul.f32 %v1474, %v1474
    %v1608 = vmul.f32 %v1475, %v1475
    %v1609 = vmul.f32 %v1476, %v1476
    %v1610 = vmul.f32 %v1477, %v1477
    %v1611 = vmul.f32 %v1478, %v1478
    %v1612 = vmul.f32 %v1479, %v1479
    %v1613 = vmul.f32 %v1480, %v1480
    %v1614 = vmul.f32 %v1481, %v1481
    %v1615 = vmul.f32 %v1482, %v1482
    %v1616 = vmul.f32 %v1483, %v1483
    %v1617 = vmul.f32 %v1484, %v1484
    %v1618 = vmul.f32 %v1485, %v1485
    %v1619 = vmul.f32 %v1486, %v1486
    %v1620 = vmul.f32 %v1487, %v1487
    %v1621 = vmul.f32 %v1488, %v1488
    %v1622 = vmul.f32 %v1489, %v1489
    %v1623 = vmul.f32 %v1490, %v1490
    %v1624 = vmul.f32 %v1491, %v1491
    %v1625 = vmul.f32 %v1492, %v1492
    %v1626 = vmul.f32 %v1493, %v1493
    %v1627 = vmul.f32 %v1494, %v1494
    %v1628 = vmul.f32 %v1495, %v1495
    %v1629 = vmul.f32 %v1496, %v1496
    %v1630 = vmul.f32 %v1497, %v1497
    %v1631 = vmul.f32 %v1498, %v1498
    %v1632 = vmul.f32 %v1499, %v1499
    %v1633 = vmul.f32 %v1500, %v1500
    %v1634 = vmul.f32 %v1501, %v1501
    %v1635 = vmul.f32 %v1502, %v1502
    %v1636 = vmul.f32 %v1503, %v1503
    %v1637 = vmul.f32 %v1504, %v1504
    %v1638 = vadd.f32 %v1574, %v1575
    %v1639 = vadd.f32 %v1638, %v1576
    %v1640 = vadd.f32 %v1639, %v1577
    %v1641 = vadd.f32 %v1640, %v1578
    %v1642 = vadd.f32 %v1641, %v1579
    %v1643 = vadd.f32 %v1642, %v1580
    %v1644 = vadd.f32 %v1643, %v1581
    %v1645 = vadd.f32 %v1644, %v1582
    %v1646 = vadd.f32 %v1645, %v1583
    %v1647 = vadd.f32 %v1646, %v1584
    %v1648 = vadd.f32 %v1647, %v1585
    %v1649 = vadd.f32 %v1648, %v1586
    %v1650 = vadd.f32 %v1649, %v1587
    %v1651 = vadd.f32 %v1650, %v1588
    %v1652 = vadd.f32 %v1651, %v1589
    %v1653 = vadd.f32 %v1652, %v1590
    %v1654 = vadd.f32 %v1653, %v1591
    %v1655 = vadd.f32 %v1654, %v1592
    %v1656 = vadd.f32 %v1655, %v1593
    %v1657 = vadd.f32 %v1656, %v1594
    %v1658 = vadd.f32 %v1657, %v1595
    %v1659 = vadd.f32 %v1658, %v1596
    %v1660 = vadd.f32 %v1659, %v1597
    %v1661 = vadd.f32 %v1660, %v1598
    %v1662 = vadd.f32 %v1661, %v1599
    %v1663 = vadd.f32 %v1662, %v1600
    %v1664 = vadd.f32 %v1663, %v1601
    %v1665 = vadd.f32 %v1664, %v1602
    %v1666 = vadd.f32 %v1665, %v1603
    %v1667 = vadd.f32 %v1666, %v1604
    %v1668 = vadd.f32 %v1667, %v1605
    %v1669 = vadd.f32 %v1668, %v1606
    %v1670 = vadd.f32 %v1669, %v1607
    %v1671 = vadd.f32 %v1670, %v1608
    %v1672 = vadd.f32 %v1671, %v1609
    %v1673 = vadd.f32 %v1672, %v1610
    %v1674 = vadd.f32 %v1673, %v1611
    %v1675 = vadd.f32 %v1674, %v1612
    %v1676 = vadd.f32 %v1675, %v1613
    %v1677 = vadd.f32 %v1676, %v1614
    %v1678 = vadd.f32 %v1677, %v1615
    %v1679 = vadd.f32 %v1678, %v1616
    %v1680 = vadd.f32 %v1679, %v1617
    %v1681 = vadd.f32 %v1680, %v1618
    %v1682 = vadd.f32 %v1681, %v1619
    %v1683 = vadd.f32 %v1682, %v1620
    %v1684 = vadd.f32 %v1683, %v1621
    %v1685 = vadd.f32 %v1684, %v1622
    %v1686 = vadd.f32 %v1685, %v1623
    %v1687 = vadd.f32 %v1686, %v1624
    %v1688 = vadd.f32 %v1687, %v1625
    %v1689 = vadd.f32 %v1688, %v1626
    %v1690 = vadd.f32 %v1689, %v1627
    %v1691 = vadd.f32 %v1690, %v1628
    %v1692 = vadd.f32 %v1691, %v1629
    %v1693 = vadd.f32 %v1692, %v1630
    %v1694 = vadd.f32 %v1693, %v1631
    %v1695 = vadd.f32 %v1694, %v1632
    %v1696 = vadd.f32 %v1695, %v1633
    %v1697 = vadd.f32 %v1696, %v1634
    %v1698 = vadd.f32 %v1697, %v1635
    %v1699 = vadd.f32 %v1698, %v1636
    %v1700 = vadd.f32 %v1699, %v1637
    %v1701 = vrot.slane %v1700, 4
    %v1702 = vadd.f32 %v1700, %v1701
    %v1703 = vrot.slane %v1702, 2
    %v1704 = vadd.f32 %v1702, %v1703
    %v1705 = vrot.slane %v1704, 1
    %v1706 = vadd.f32 %v1704, %v1705
    %v1707 = vmul.f32 %v1573, 0.001953125
    %v1708 = vmul.f32 %v1706, 0.001953125
    %v1709 = vmul.f32 %v1707, %v1707
    %v1710 = vsub.f32 %v1708, %v1709
    %v1711 = vmax.f32 %v1710, 0.0
    %v1712 = vadd.f32 %v1711, 0.001
    %v1713 = vrsqrt.pop %v1712
    %v1714 = vmul.f32 %v1713, %v1712
    %v1715 = vmul.f32 %v1714, %v1713
    %v1716 = vmul.f32 0.5, %v1715
    %v1717 = vsub.f32 1.5, %v1716
    %v1718 = vmul.f32 %v1713, %v1717
    %vm1719 = vweird.f32 %v1712
    %vm1720 = vweird.f32 %v1713
    %vm1721 = vmor %vm1719, %vm1720
    %v1722 = vsel %vm1721, %v1713, %v1718
    %v1723 = vld [vmem:[%s2] sm:$0x1]
    %v1724 = vmul.f32 %v1723, %v1722
    %v1725 = vld [vmem:[%s3] sm:$0x1]
    %v1726 = vmul.f32 %v1707, %v1724
    %v1727 = vsub.f32 %v1725, %v1726
    %v1729 = vperm.slane %v1724, 0
    %v1731 = vmul.f32 %v1441, %v1729
    %v1732 = vmul.f32 %v1442, %v1729
    %v1733 = vmul.f32 %v1443, %v1729
    %v1734 = vmul.f32 %v1444, %v1729
    %v1735 = vmul.f32 %v1445, %v1729
    %v1736 = vmul.f32 %v1446, %v1729
    %v1737 = vmul.f32 %v1447, %v1729
    %v1738 = vmul.f32 %v1448, %v1729
    %v1739 = vmul.f32 %v1449, %v1729
    %v1740 = vmul.f32 %v1450, %v1729
    %v1741 = vmul.f32 %v1451, %v1729
    %v1742 = vmul.f32 %v1452, %v1729
    %v1743 = vmul.f32 %v1453, %v1729
    %v1744 = vmul.f32 %v1454, %v1729
    %v1745 = vmul.f32 %v1455, %v1729
    %v1746 = vmul.f32 %v1456, %v1729
    %v1747 = vmul.f32 %v1457, %v1729
    %v1748 = vmul.f32 %v1458, %v1729
    %v1749 = vmul.f32 %v1459, %v1729
    %v1750 = vmul.f32 %v1460, %v1729
    %v1751 = vmul.f32 %v1461, %v1729
    %v1752 = vmul.f32 %v1462, %v1729
    %v1753 = vmul.f32 %v1463, %v1729
    %v1754 = vmul.f32 %v1464, %v1729
    %v1755 = vmul.f32 %v1465, %v1729
    %v1756 = vmul.f32 %v1466, %v1729
    %v1757 = vmul.f32 %v1467, %v1729
    %v1758 = vmul.f32 %v1468, %v1729
    %v1759 = vmul.f32 %v1469, %v1729
    %v1760 = vmul.f32 %v1470, %v1729
    %v1761 = vmul.f32 %v1471, %v1729
    %v1762 = vmul.f32 %v1472, %v1729
    %v1763 = vmul.f32 %v1473, %v1729
    %v1764 = vmul.f32 %v1474, %v1729
    %v1765 = vmul.f32 %v1475, %v1729
    %v1766 = vmul.f32 %v1476, %v1729
    %v1767 = vmul.f32 %v1477, %v1729
    %v1768 = vmul.f32 %v1478, %v1729
    %v1769 = vmul.f32 %v1479, %v1729
    %v1770 = vmul.f32 %v1480, %v1729
    %v1771 = vmul.f32 %v1481, %v1729
    %v1772 = vmul.f32 %v1482, %v1729
    %v1773 = vmul.f32 %v1483, %v1729
    %v1774 = vmul.f32 %v1484, %v1729
    %v1775 = vmul.f32 %v1485, %v1729
    %v1776 = vmul.f32 %v1486, %v1729
    %v1777 = vmul.f32 %v1487, %v1729
    %v1778 = vmul.f32 %v1488, %v1729
    %v1779 = vmul.f32 %v1489, %v1729
    %v1780 = vmul.f32 %v1490, %v1729
    %v1781 = vmul.f32 %v1491, %v1729
    %v1782 = vmul.f32 %v1492, %v1729
    %v1783 = vmul.f32 %v1493, %v1729
    %v1784 = vmul.f32 %v1494, %v1729
    %v1785 = vmul.f32 %v1495, %v1729
    %v1786 = vmul.f32 %v1496, %v1729
    %v1787 = vmul.f32 %v1497, %v1729
    %v1788 = vmul.f32 %v1498, %v1729
    %v1789 = vmul.f32 %v1499, %v1729
    %v1790 = vmul.f32 %v1500, %v1729
    %v1791 = vmul.f32 %v1501, %v1729
    %v1792 = vmul.f32 %v1502, %v1729
    %v1793 = vmul.f32 %v1503, %v1729
    %v1794 = vmul.f32 %v1504, %v1729
    %v1796 = vperm.slane %v1727, 0
    %v1798 = vadd.f32 %v1731, %v1796
    %v1799 = vadd.f32 %v1732, %v1796
    %v1800 = vadd.f32 %v1733, %v1796
    %v1801 = vadd.f32 %v1734, %v1796
    %v1802 = vadd.f32 %v1735, %v1796
    %v1803 = vadd.f32 %v1736, %v1796
    %v1804 = vadd.f32 %v1737, %v1796
    %v1805 = vadd.f32 %v1738, %v1796
    %v1806 = vadd.f32 %v1739, %v1796
    %v1807 = vadd.f32 %v1740, %v1796
    %v1808 = vadd.f32 %v1741, %v1796
    %v1809 = vadd.f32 %v1742, %v1796
    %v1810 = vadd.f32 %v1743, %v1796
    %v1811 = vadd.f32 %v1744, %v1796
    %v1812 = vadd.f32 %v1745, %v1796
    %v1813 = vadd.f32 %v1746, %v1796
    %v1814 = vadd.f32 %v1747, %v1796
    %v1815 = vadd.f32 %v1748, %v1796
    %v1816 = vadd.f32 %v1749, %v1796
    %v1817 = vadd.f32 %v1750, %v1796
    %v1818 = vadd.f32 %v1751, %v1796
    %v1819 = vadd.f32 %v1752, %v1796
    %v1820 = vadd.f32 %v1753, %v1796
    %v1821 = vadd.f32 %v1754, %v1796
    %v1822 = vadd.f32 %v1755, %v1796
    %v1823 = vadd.f32 %v1756, %v1796
    %v1824 = vadd.f32 %v1757, %v1796
    %v1825 = vadd.f32 %v1758, %v1796
    %v1826 = vadd.f32 %v1759, %v1796
    %v1827 = vadd.f32 %v1760, %v1796
    %v1828 = vadd.f32 %v1761, %v1796
    %v1829 = vadd.f32 %v1762, %v1796
    %v1830 = vadd.f32 %v1763, %v1796
    %v1831 = vadd.f32 %v1764, %v1796
    %v1832 = vadd.f32 %v1765, %v1796
    %v1833 = vadd.f32 %v1766, %v1796
    %v1834 = vadd.f32 %v1767, %v1796
    %v1835 = vadd.f32 %v1768, %v1796
    %v1836 = vadd.f32 %v1769, %v1796
    %v1837 = vadd.f32 %v1770, %v1796
    %v1838 = vadd.f32 %v1771, %v1796
    %v1839 = vadd.f32 %v1772, %v1796
    %v1840 = vadd.f32 %v1773, %v1796
    %v1841 = vadd.f32 %v1774, %v1796
    %v1842 = vadd.f32 %v1775, %v1796
    %v1843 = vadd.f32 %v1776, %v1796
    %v1844 = vadd.f32 %v1777, %v1796
    %v1845 = vadd.f32 %v1778, %v1796
    %v1846 = vadd.f32 %v1779, %v1796
    %v1847 = vadd.f32 %v1780, %v1796
    %v1848 = vadd.f32 %v1781, %v1796
    %v1849 = vadd.f32 %v1782, %v1796
    %v1850 = vadd.f32 %v1783, %v1796
    %v1851 = vadd.f32 %v1784, %v1796
    %v1852 = vadd.f32 %v1785, %v1796
    %v1853 = vadd.f32 %v1786, %v1796
    %v1854 = vadd.f32 %v1787, %v1796
    %v1855 = vadd.f32 %v1788, %v1796
    %v1856 = vadd.f32 %v1789, %v1796
    %v1857 = vadd.f32 %v1790, %v1796
    %v1858 = vadd.f32 %v1791, %v1796
    %v1859 = vadd.f32 %v1792, %v1796
    %v1860 = vadd.f32 %v1793, %v1796
    %v1861 = vadd.f32 %v1794, %v1796
    %1862 = vst [vmem:[#allocation6] sm:$0xff] %v1798
    %1863 = vst [vmem:[#allocation6 + $0x8] sm:$0xff] %v1799
    %1864 = vst [vmem:[#allocation6 + $0x10] sm:$0xff] %v1800
    %1865 = vst [vmem:[#allocation6 + $0x18] sm:$0xff] %v1801
    %1866 = vst [vmem:[#allocation6 + $0x20] sm:$0xff] %v1802
    %1867 = vst [vmem:[#allocation6 + $0x28] sm:$0xff] %v1803
    %1868 = vst [vmem:[#allocation6 + $0x30] sm:$0xff] %v1804
    %1869 = vst [vmem:[#allocation6 + $0x38] sm:$0xff] %v1805
    %1870 = vst [vmem:[#allocation6 + $0x40] sm:$0xff] %v1806
    %1871 = vst [vmem:[#allocation6 + $0x48] sm:$0xff] %v1807
    %1872 = vst [vmem:[#allocation6 + $0x50] sm:$0xff] %v1808
    %1873 = vst [vmem:[#allocation6 + $0x58] sm:$0xff] %v1809
    %1874 = vst [vmem:[#allocation6 + $0x60] sm:$0xff] %v1810
    %1875 = vst [vmem:[#allocation6 + $0x68] sm:$0xff] %v1811
    %1876 = vst [vmem:[#allocation6 + $0x70] sm:$0xff] %v1812
    %1877 = vst [vmem:[#allocation6 + $0x78] sm:$0xff] %v1813
    %1878 = vst [vmem:[#allocation6 + $0x80] sm:$0xff] %v1814
    %1879 = vst [vmem:[#allocation6 + $0x88] sm:$0xff] %v1815
    %1880 = vst [vmem:[#allocation6 + $0x90] sm:$0xff] %v1816
    %1881 = vst [vmem:[#allocation6 + $0x98] sm:$0xff] %v1817
    %1882 = vst [vmem:[#allocation6 + $0xa0] sm:$0xff] %v1818
    %1883 = vst [vmem:[#allocation6 + $0xa8] sm:$0xff] %v1819
    %1884 = vst [vmem:[#allocation6 + $0xb0] sm:$0xff] %v1820
    %1885 = vst [vmem:[#allocation6 + $0xb8] sm:$0xff] %v1821
    %1886 = vst [vmem:[#allocation6 + $0xc0] sm:$0xff] %v1822
    %1887 = vst [vmem:[#allocation6 + $0xc8] sm:$0xff] %v1823
    %1888 = vst [vmem:[#allocation6 + $0xd0] sm:$0xff] %v1824
    %1889 = vst [vmem:[#allocation6 + $0xd8] sm:$0xff] %v1825
    %1890 = vst [vmem:[#allocation6 + $0xe0] sm:$0xff] %v1826
    %1891 = vst [vmem:[#allocation6 + $0xe8] sm:$0xff] %v1827
    %1892 = vst [vmem:[#allocation6 + $0xf0] sm:$0xff] %v1828
    %1893 = vst [vmem:[#allocation6 + $0xf8] sm:$0xff] %v1829
    %1894 = vst [vmem:[#allocation6 + $0x100] sm:$0xff] %v1830
    %1895 = vst [vmem:[#allocation6 + $0x108] sm:$0xff] %v1831
    %1896 = vst [vmem:[#allocation6 + $0x110] sm:$0xff] %v1832
    %1897 = vst [vmem:[#allocation6 + $0x118] sm:$0xff] %v1833
    %1898 = vst [vmem:[#allocation6 + $0x120] sm:$0xff] %v1834
    %1899 = vst [vmem:[#allocation6 + $0x128] sm:$0xff] %v1835
    %1900 = vst [vmem:[#allocation6 + $0x130] sm:$0xff] %v1836
    %1901 = vst [vmem:[#allocation6 + $0x138] sm:$0xff] %v1837
    %1902 = vst [vmem:[#allocation6 + $0x140] sm:$0xff] %v1838
    %1903 = vst [vmem:[#allocation6 + $0x148] sm:$0xff] %v1839
    %1904 = vst [vmem:[#allocation6 + $0x150] sm:$0xff] %v1840
    %1905 = vst [vmem:[#allocation6 + $0x158] sm:$0xff] %v1841
    %1906 = vst [vmem:[#allocation6 + $0x160] sm:$0xff] %v1842
    %1907 = vst [vmem:[#allocation6 + $0x168] sm:$0xff] %v1843
    %1908 = vst [vmem:[#allocation6 + $0x170] sm:$0xff] %v1844
    %1909 = vst [vmem:[#allocation6 + $0x178] sm:$0xff] %v1845
    %1910 = vst [vmem:[#allocation6 + $0x180] sm:$0xff] %v1846
    %1911 = vst [vmem:[#allocation6 + $0x188] sm:$0xff] %v1847
    %1912 = vst [vmem:[#allocation6 + $0x190] sm:$0xff] %v1848
    %1913 = vst [vmem:[#allocation6 + $0x198] sm:$0xff] %v1849
    %1914 = vst [vmem:[#allocation6 + $0x1a0] sm:$0xff] %v1850
    %1915 = vst [vmem:[#allocation6 + $0x1a8] sm:$0xff] %v1851
    %1916 = vst [vmem:[#allocation6 + $0x1b0] sm:$0xff] %v1852
    %1917 = vst [vmem:[#allocation6 + $0x1b8] sm:$0xff] %v1853
    %1918 = vst [vmem:[#allocation6 + $0x1c0] sm:$0xff] %v1854
    %1919 = vst [vmem:[#allocation6 + $0x1c8] sm:$0xff] %v1855
    %1920 = vst [vmem:[#allocation6 + $0x1d0] sm:$0xff] %v1856
    %1921 = vst [vmem:[#allocation6 + $0x1d8] sm:$0xff] %v1857
    %1922 = vst [vmem:[#allocation6 + $0x1e0] sm:$0xff] %v1858
    %1923 = vst [vmem:[#allocation6 + $0x1e8] sm:$0xff] %v1859
    %1924 = vst [vmem:[#allocation6 + $0x1f0] sm:$0xff] %v1860
    %1925 = vst [vmem:[#allocation6 + $0x1f8] sm:$0xff] %v1861
    // Predicated region
    $region26: #{tpu_custom_call.1} parent=1 // pred_check
      _
    $region27: #{tpu_custom_call.1} parent=1 // pred_check_branch
      %1927 = sbr.rel (0) target = $region29
    $region28: #{tpu_custom_call.1} parent=1 // pred_region
      %1929 = vsyncadd [#allocation5], 0
      %s1930 = sshll.u32 [#allocation6], 4
      %s1931 = int_to_ptr.vmem [resolvable:$true] %s1930
      %s1932 = sshll.u32 %s4, 4
      %s1933 = int_to_ptr.hbm [resolvable:$true] %s1932
      %1938 = dma.vmem_to_hbm [thread:$0]  %s1931, 8192, %s1933, [#allocation5], 128, 128, 8
    $region29: #{tpu_custom_call.1} parent=1 // pred_fallthru
      _
    // Predicated region
    $region30: #{tpu_custom_call.1} parent=1 // pred_check
      _
    $region31: #{tpu_custom_call.1} parent=1 // pred_check_branch
      %1940 = sbr.rel (0) target = $region33
    $region32: #{tpu_custom_call.1} parent=1 // pred_region
      %1942 = dma.done [#allocation5], 8192
    $region33: #{tpu_custom_call.1} parent=1 // pred_fallthru
      _
    %1943 = vsyncpa [#allocation4], 1
    %1944 = vsyncpa [#allocation5], 1

</llo_original>
